<compile_context>
chip_gen: v6e
topology: v6e:2x2x1
jax: 0.10.0
libtpu: 0.0.40
codegen_flags: <defaults>
</compile_context>

<pallas_src>
import functools

import jax
import jax.numpy as jnp
from jax.experimental import pallas as pl
from jax.experimental.pallas import tpu as pltpu

LEN_FEATURE = 1024  # fixed by the PyTorch module (len_feature = 1024)


def _largest_aligned_divisor(dim, target, align):
    """Largest divisor of `dim` that is <= target and a multiple of `align`.

    Returns `dim` itself when dim <= target (a full-extent block is always a
    legal BlockSpec).  Never returns a block larger than `target` otherwise,
    so block sizes stay bounded (no v7x VMEM hazard).
    """
    if dim <= target:
        return dim
    t = (target // align) * align
    while t >= align:
        if dim % t == 0:
            return t
        t -= align
    raise ValueError(f"no divisor of {dim} aligned to {align} and <= {target}")


# ----------------------------------------------------------------------------
# Kernel A: per-image embedding (tiled bf16 matmul + f32 bias add)
#   out[m, n] = sum_k x[m, k] * W[k, n] + b[n]
# ----------------------------------------------------------------------------
def _embed_kernel(x_ref, w_ref, b_ref, o_ref, acc_ref):
    @pl.when(pl.program_id(2) == 0)
    def _():
        acc_ref[...] = jnp.zeros_like(acc_ref)

    acc_ref[...] += jnp.dot(
        x_ref[...], w_ref[...], preferred_element_type=jnp.float32
    )

    @pl.when(pl.program_id(2) == pl.num_programs(2) - 1)
    def _():
        o_ref[...] = (acc_ref[...] + b_ref[...]).astype(o_ref.dtype)


def embed(x_bf, w_bf, b1):
    """x_bf: (M, K) bf16 flattened images; w_bf: (K, F) bf16; b1: (F,) f32."""
    M, K = x_bf.shape
    F = w_bf.shape[1]
    assert K % 128 == 0 and F % 128 == 0, (
        "embed expects MXU-aligned K/F (true for the 1024-d DenseNet head)"
    )

    # tm covers all of M when reasonable -> grid dim 0 == 1 -> W1 (the dominant
    # HBM traffic when M is small) is streamed exactly once.
    if M <= 512:
        tm = M
    else:
        assert M % 8 == 0
        tm = _largest_aligned_divisor(M, 256, 8)
    tn = _largest_aligned_divisor(F, 512, 128)
    tk = _largest_aligned_divisor(K, 1024, 128)
    grid = (M // tm, F // tn, K // tk)

    b_f32 = b1.reshape(1, F).astype(jnp.float32)

    # TODO(synk): optional fp8 weight path (per-tile scales) for v7x only.
    return pl.pallas_call(
        _embed_kernel,
        grid=grid,
        in_specs=[
            pl.BlockSpec((tm, tk), lambda i, j, k: (i, k)),
            pl.BlockSpec((tk, tn), lambda i, j, k: (k, j)),
            pl.BlockSpec((1, tn), lambda i, j, k: (0, j)),
        ],
        out_specs=pl.BlockSpec((tm, tn), lambda i, j, k: (i, j)),
        out_shape=jax.ShapeDtypeStruct((M, F), jnp.float32),
        scratch_shapes=[pltpu.VMEM((tm, tn), jnp.float32)],
        compiler_params=pltpu.CompilerParams(
            dimension_semantics=("parallel", "parallel", "arbitrary")
        ),
    )(x_bf, w_bf, b_f32)


# ----------------------------------------------------------------------------
# Kernel B: pairwise squared-difference verification features.
#   d[k, b, 0, j, :] = (fp[b] - fg[(b + k) % B, j]) ** 2
#
# fp/fg/d are presented to the kernel in a lane/sublane-dense "Z-fold" layout:
# each G*F feature row is viewed as an (8, G*F//8) tile (G*F//8 is a multiple
# of 128), so all vector loads/stores are unmasked.  The gallery is doubled
# along dim 0 so the modular roll is the contiguous window fg2[k : k+B]
# (a single leading-dim dynamic slice).  Grid is over blocks of kb roll
# values; each step writes one dense (kb*B, 8, L) output slab.
# ----------------------------------------------------------------------------
def _pairwise_kernel(fp_ref, fg2_ref, d_ref, *, kb):
    t = pl.program_id(0)
    B = fp_ref.shape[0]
    fp = fp_ref[...]                                # (B, 8, L), grid-resident
    for dk in range(kb):                            # static unroll, kb small
        k = t * kb + dk
        win = fg2_ref[pl.ds(k, B)]                  # rolled gallery, (B, 8, L)
        diff = fp - win
        d_ref[pl.ds(dk * B, B)] = diff * diff       # dense sublane/lane store


def pairwise_d(fp, fg):
    """fp: (B, F) probe features; fg: (B, G, F) gallery features.

    Returns d of shape (B, B, 1, G, F) with
      d[k, b, 0, j, :] = (fp[b] - fg[(b + k) % B, j]) ** 2
    """
    B, F = fp.shape
    G = fg.shape[1]
    GF = G * F
    assert GF % (8 * 128) == 0, "need G*F divisible by 1024 for dense Z-fold"
    L = GF // 8

    # Wrapper-side layout plumbing (tiny tensors): Z-fold + doubled gallery.
    fp_wide = jnp.tile(fp[:, None, :], (1, G, 1)).reshape(B, 8, L)
    fg_flat = fg.reshape(B, GF)
    fg2 = jnp.concatenate([fg_flat, fg_flat], axis=0).reshape(2 * B, 8, L)

    # Coarsen the roll axis: largest kb (divisor of B) with <= 1 MiB output
    # slab per step while keeping >= min(4, B) grid steps for v7x's 2 TCs.
    slab_bytes = B * GF * 4
    kb = 1
    for cand in range(1, B + 1):
        if B % cand:
            continue
        if cand * slab_bytes <= (1 << 20) and (B // cand) >= min(4, B):
            kb = cand

    # VMEM budget: count Pallas double-buffering of every BlockSpec operand
    # (including constant-index resident inputs) and the 2x-buffered output
    # slab.  Conservative for v7x (32 MiB scoped / 64 MiB physical VMEM).
    vmem_est = (2 * (B * GF * 4)            # fp_wide, double-buffered
                + 2 * (2 * B * GF * 4)      # fg2, double-buffered
                + 2 * (kb * B * GF * 4))    # output slab, double-buffered
    assert vmem_est <= 24 * 1024 * 1024, (
        "probe/gallery features too large for VMEM residency"
    )  # TODO(synk): add a streaming feat_g tiling fallback for very large B.

    kernel = functools.partial(_pairwise_kernel, kb=kb)
    d2 = pl.pallas_call(
        kernel,
        grid=(B // kb,),
        in_specs=[
            # Constant index maps -> blocks stay resident across the grid.
            pl.BlockSpec((B, 8, L), lambda t: (0, 0, 0)),
            pl.BlockSpec((2 * B, 8, L), lambda t: (0, 0, 0)),
        ],
        out_specs=pl.BlockSpec((kb * B, 8, L), lambda t: (t, 0, 0)),
        out_shape=jax.ShapeDtypeStruct((B * B, 8, L), jnp.float32),
        compiler_params=pltpu.CompilerParams(
            dimension_semantics=("parallel",),   # shard coarse k-blocks on v7x
            vmem_limit_bytes=32 * 1024 * 1024,
        ),
    )(fp_wide, fg2)

    # Row k*B + b of d2 holds the (G*F)-flattened slab for (k, b).
    return d2.reshape(B, B, 1, G, F)


# ----------------------------------------------------------------------------
# Full forward: embedding (Pallas) -> pairwise d (Pallas); w/label in plain
# XLA (integer-label compares only).
# ----------------------------------------------------------------------------
def sggnn_siamese_forward(x, y, W1, b1):
    B, N, C, H, W = x.shape
    G = N - 1
    F = LEN_FEATURE

    # Single bf16 cast in the wrapper (no intermediate f32 HBM copy).  Callers
    # running repeatedly should keep W1 cached as bf16.
    x_bf = x.reshape(B * N, C * H * W).astype(jnp.bfloat16)
    w_bf = W1.astype(jnp.bfloat16)

    emb = embed(x_bf, w_bf, b1).reshape(B, N, F)       # f32 features
    fp = emb[:, 0, :]                                  # (B, F)    probe
    fg = emb[:, 1:, :]                                 # (B, G, F) gallery

    d = pairwise_d(fp, fg)                             # (B, B, 1, G, F)

    # Label outputs in plain XLA (keeps masked sub-128-lane stores out of the
    # Pallas kernels).
    y = y.astype(jnp.int32)
    yp = y[:, :1]                                      # (B, 1)
    yg = y[:, 1:]                                      # (B, G)
    idx = (jnp.arange(B)[:, None] + jnp.arange(B)[None, :]) % B   # idx[k, b]
    ygr = yg[idx]                                      # (B, B, G) rolled
    w = (yg[None, :, :, None] == ygr[:, :, None, :]).astype(jnp.float32)
    label = (yp[None, :, :, None] == ygr[:, :, None, :]).astype(jnp.float32)
    return d, w, label


# ----------------------------------------------------------------------------
# Pure-JAX reference (mirrors the PyTorch loops) for a correctness check.
# Uses the same bf16 input cast as the kernel's matmul.
# ----------------------------------------------------------------------------
def reference_forward(x, y, W1, b1):
    B, N = x.shape[0], x.shape[1]
    x_flat = x.reshape(B * N, -1).astype(jnp.bfloat16).astype(jnp.float32)
    W1f = W1.astype(jnp.bfloat16).astype(jnp.float32)
    emb = (x_flat @ W1f + b1).reshape(B, N, -1)
    fp, fg = emb[:, :1], emb[:, 1:]
    yp, yg = y[:, :1], y[:, 1:]
    d, w, lab = [], [], []
    for k in range(B):
        fgr = jnp.roll(fg, -k, axis=0)   # torch.cat((x_g[k:], x_g[:k]), 0)
        ygr = jnp.roll(yg, -k, axis=0)
        d.append((fp[:, :, None, :] - fgr[:, None, :, :]) ** 2)
        w.append((yg[:, :, None] == ygr[:, None, :]).astype(jnp.float32))
        lab.append((yp[:, :, None] == ygr[:, None, :]).astype(jnp.float32))
    return jnp.stack(d), jnp.stack(w), jnp.stack(lab)


if __name__ == "__main__":
    # Small shapes consistent with the module: 1 probe + 3 gallery per id.
    B, N, C, H, Wd = 2, 4, 4, 16, 16            # C*H*W = 1024 input features
    key = jax.random.PRNGKey(0)
    kx, ky, kw = jax.random.split(key, 3)

    x = jax.random.normal(kx, (B, N, C, H, Wd), dtype=jnp.float32)
    y = jax.random.randint(ky, (B, N), 0, 3, dtype=jnp.int32)

    # Deterministic synthetic backbone parameters (stand-in for densenet121).
    W1 = jax.random.normal(kw, (C * H * Wd, LEN_FEATURE), dtype=jnp.float32) * 0.02
    b1 = jnp.zeros((LEN_FEATURE,), dtype=jnp.float32)

    d, w, label = sggnn_siamese_forward(x, y, W1, b1)
    jax.block_until_ready((d, w, label))

    # Shape + semantics check against the pure-JAX reference.
    d_ref, w_ref, lab_ref = reference_forward(x, y, W1, b1)
    assert d.shape == (B, B, 1, N - 1, LEN_FEATURE)
    assert w.shape == (B, B, N - 1, N - 1)
    assert label.shape == (B, B, 1, N - 1)
    assert jnp.allclose(d, d_ref, rtol=1e-3, atol=1e-3)
    assert jnp.array_equal(w, w_ref)
    assert jnp.array_equal(label, lab_ref)

    print("KERNEL_OK")
</pallas_src>

<mosaic_0001>
module attributes {stable_mosaic.version = 11 : i64} {
  func.func @_embed_kernel(%arg0: i32, %arg1: i32, %arg2: i32, %arg3: memref<8x1024xbf16, #tpu.memory_space<vmem>>, %arg4: memref<1024x512xbf16, #tpu.memory_space<vmem>>, %arg5: memref<1x512xf32, #tpu.memory_space<vmem>>, %arg6: memref<8x512xf32, #tpu.memory_space<vmem>>, %arg7: memref<8x512xf32, #tpu.memory_space<vmem>>) attributes {dimension_semantics = [#tpu.dimension_semantics<parallel>, #tpu.dimension_semantics<parallel>, #tpu.dimension_semantics<arbitrary>], iteration_bounds = array<i64: 1, 2, 1>, scalar_prefetch = 0 : i64, scratch_operands = 1 : i64, tpu.core_type = #tpu.core_type<tc>, window_params = [{transform_indices = @transform_0, window_bounds = array<i64: 8, 1024>}, {transform_indices = @transform_1, window_bounds = array<i64: 1024, 512>}, {transform_indices = @transform_2, window_bounds = array<i64: 1, 512>}, {transform_indices = @transform_3, window_bounds = array<i64: 8, 512>}]} {
    %c0_i32 = arith.constant 0 : i32
    %0 = arith.cmpi eq, %arg2, %c0_i32 : i32
    %1 = arith.extui %0 : i1 to i32
    %c0_i32_0 = arith.constant 0 : i32
    %2 = arith.cmpi ne, %1, %c0_i32_0 : i32
    scf.if %2 {
      %cst_10 = arith.constant 0.000000e+00 : f32
      %12 = vector.broadcast %cst_10 : f32 to vector<8x512xf32>
      %c0_11 = arith.constant 0 : index
      %c0_12 = arith.constant 0 : index
      %13 = vector.load %arg7[%c0_11, %c0_12] : memref<8x512xf32, #tpu.memory_space<vmem>>, vector<8x512xf32>
      tpu.vector_store %arg7[%c0_11, %c0_12], %12 {strides = array<i32>} : memref<8x512xf32, #tpu.memory_space<vmem>>, vector<8x512xf32>,
    } else {
    }
    %c0 = arith.constant 0 : index
    %c0_1 = arith.constant 0 : index
    %3 = vector.load %arg7[%c0, %c0_1] : memref<8x512xf32, #tpu.memory_space<vmem>>, vector<8x512xf32>
    %c0_2 = arith.constant 0 : index
    %c0_3 = arith.constant 0 : index
    %4 = vector.load %arg3[%c0_2, %c0_3] : memref<8x1024xbf16, #tpu.memory_space<vmem>>, vector<8x1024xbf16>
    %c0_4 = arith.constant 0 : index
    %c0_5 = arith.constant 0 : index
    %5 = vector.load %arg4[%c0_4, %c0_5] : memref<1024x512xbf16, #tpu.memory_space<vmem>>, vector<1024x512xbf16>
    %cst = arith.constant dense<0.000000e+00> : vector<8x512xf32>
    %6 = tpu.matmul %4, %5, %cst {dimension_numbers = #tpu.dot_dimension_numbers<[1], [0], [0], [1], [0, 0, 1, 1], [], []>} : vector<8x1024xbf16>, vector<1024x512xbf16>, vector<8x512xf32> -> vector<8x512xf32>
    %7 = arith.addf %3, %6 : vector<8x512xf32>
    %c0_6 = arith.constant 0 : index
    %c0_7 = arith.constant 0 : index
    %8 = vector.load %arg7[%c0_6, %c0_7] : memref<8x512xf32, #tpu.memory_space<vmem>>, vector<8x512xf32>
    tpu.vector_store %arg7[%c0_6, %c0_7], %7 {strides = array<i32>} : memref<8x512xf32, #tpu.memory_space<vmem>>, vector<8x512xf32>,
    %c0_i32_8 = arith.constant 0 : i32
    %9 = arith.cmpi eq, %arg2, %c0_i32_8 : i32
    %10 = arith.extui %9 : i1 to i32
    %c0_i32_9 = arith.constant 0 : i32
    %11 = arith.cmpi ne, %10, %c0_i32_9 : i32
    scf.if %11 {
      %c0_10 = arith.constant 0 : index
      %c0_11 = arith.constant 0 : index
      %12 = vector.load %arg7[%c0_10, %c0_11] : memref<8x512xf32, #tpu.memory_space<vmem>>, vector<8x512xf32>
      %c0_12 = arith.constant 0 : index
      %c0_13 = arith.constant 0 : index
      %13 = vector.load %arg5[%c0_12, %c0_13] : memref<1x512xf32, #tpu.memory_space<vmem>>, vector<1x512xf32>
      %14 = vector.broadcast %13 : vector<1x512xf32> to vector<8x512xf32>
      %15 = arith.addf %12, %14 : vector<8x512xf32>
      %c0_14 = arith.constant 0 : index
      %c0_15 = arith.constant 0 : index
      %16 = vector.load %arg6[%c0_14, %c0_15] : memref<8x512xf32, #tpu.memory_space<vmem>>, vector<8x512xf32>
      tpu.vector_store %arg6[%c0_14, %c0_15], %15 {strides = array<i32>} : memref<8x512xf32, #tpu.memory_space<vmem>>, vector<8x512xf32>,
    } else {
    }
    return
  }
  func.func @transform_0(%arg0: i32, %arg1: i32, %arg2: i32) -> (i32, i32) {
    %c0_i32 = arith.constant 0 : i32
    return %arg0, %arg2 : i32, i32
  }
  func.func @transform_1(%arg0: i32, %arg1: i32, %arg2: i32) -> (i32, i32) {
    %c0_i32 = arith.constant 0 : i32
    return %arg2, %arg1 : i32, i32
  }
  func.func @transform_2(%arg0: i32, %arg1: i32, %arg2: i32) -> (i32, i32) {
    %c0_i32 = arith.constant 0 : i32
    %c0_i32_0 = arith.constant 0 : i32
    return %c0_i32, %arg1 : i32, i32
  }
  func.func @transform_3(%arg0: i32, %arg1: i32, %arg2: i32) -> (i32, i32) {
    %c0_i32 = arith.constant 0 : i32
    return %arg0, %arg1 : i32, i32
  }
}

</mosaic_0001>

<llo_original>
// kernel: tpu_custom_call.1
$region0: #{tpu_custom_call.1}
  #allocation0 [shape = 'u32[]', space=smem, size = 0x4, offset = 0x4, fixed_abs, tag = 'smem constant byte address 0x4 - core index']
  #allocation1 [shape = 'u32[144,128]{1,0:T(1,128)}', space=vmem, size = 0x12000, scoped, tag = 'internal scratch']
  #allocation2 [shape = 'f32[8,512]{1,0:T(8,128)}', space=vmem, size = 0x4000, scoped, tag = 'scratch operand']
  %s0 = inlined_call_operand.hbm [shape: bf16[8,1024], index: 0, kind: input, shape index: {}]
  %s1 = inlined_call_operand.hbm [shape: bf16[1024,1024], index: 1, kind: input, shape index: {}]
  %s2 = inlined_call_operand.hbm [shape: f32[1,1024], index: 2, kind: input, shape index: {}]
  %s3 = inlined_call_operand.hbm [shape: f32[8,1024], index: 3, kind: output, shape index: {}]
  %s4 = sld [smem:[#allocation0]]
  $region65: #{tpu_custom_call.1} parent=0
    _
  %s6 = ssub.s32 1, %s4
  %s7 = scalar_select 0, %s6, %s4
  $region1: #{tpu_custom_call.1} parent=0
    #allocation3 [shape = 'u8[16384]{0}', space=vmem, size = 0x4000, scoped, tag = 'input window, operand 0, single buffered']
    #allocation4 [shape = 's32[2]{0}', space=sflag, size = 0x8, scoped, tag = 'scoped memory for tpu_custom_call.1']
    #allocation5 [shape = 's32[2]{0}', space=sflag, size = 0x8, scoped, tag = 'scoped memory for tpu_custom_call.1']
    #allocation6 [shape = 'u8[2097152]{0}', space=vmem, size = 0x200000, scoped, tag = 'input window, operand 1']
    #allocation7 [shape = 's32[2]{0}', space=sflag, size = 0x8, scoped, tag = 'scoped memory for tpu_custom_call.1']
    #allocation8 [shape = 'u8[4096]{0}', space=vmem, size = 0x1000, scoped, tag = 'input window, operand 2']
    #allocation9 [shape = 'u8[32768]{0}', space=vmem, size = 0x8000, scoped, tag = 'output window, operand 0']
    %8 = vsyncpa [#allocation4], 0
    %9 = vsyncpa [#allocation7], 0
    %s10 = scalar_lea.sflag [#allocation7], 1
    %11 = vsyncpa %s10, 0
    %12 = vsyncpa [#allocation5], 0
    %s13 = scalar_lea.sflag [#allocation5], 1
    %14 = vsyncpa %s13, 0
    loop: start=0, step=1, limit=4
    $region2: #{tpu_custom_call.1} parent=1 // loop_pre_header
      _
    $region3: #{tpu_custom_call.1} parent=1 // loop_header
      %s16 = sphi 0, %s20
      %p17 = scmp.ge.s32.totalorder %s16, 4
      %s23 = sphi 0, %s42
      %s24 = sphi 0, %s38
      %s25 = sphi 0, %s34
      %s26 = sphi 0, %s23
      %s27 = sphi 0, %s24
      %s28 = sphi 0, %s25
      %s29 = sphi 0, %s26
      %s30 = sphi 0, %s27
      %s31 = sphi 0, %s28
      %s47 = sphi 0, %s49
      %s50 = sphi 0, %s47
      %s51 = sphi 0, %s50
      %s67 = sphi 0, %s51
      %s75 = sphi 0, %s77
      %s78 = sphi 0, %s75
      %s79 = sphi 0, %s78
      %s95 = sphi 0, %s79
      %s101 = sphi 0, %s103
      %s104 = sphi 0, %s101
      %s105 = sphi 0, %s104
      %s121 = sphi 0, %s105
      %s129 = sphi 0, %s131
      %s132 = sphi 0, %s129
      %s133 = sphi 0, %s132
      %s149 = sphi 0, %s133
    $region4: #{tpu_custom_call.1} parent=1 // loop_header_branch
      %19 = sbr.rel (%p17) target = $region8
    $region5: #{tpu_custom_call.1} parent=1 // loop_body
      %s21 = ssub.s32 %s16, 1
      %s22 = ssub.s32 %s16, 2
      %s32 = sadd.s32 1, %s25
      %p33 = scmp.ge.s32.totalorder %s32, 1
      %s34 = scalar_select %p33, 0, %s32
      %s35 = sadd.s32 1, %s24
      %s36 = scalar_select %p33, %s35, %s24
      %p37 = scmp.ge.s32.totalorder %s36, 2
      %s38 = scalar_select %p37, 0, %s36
      %s39 = sadd.s32 1, %s23
      %s40 = scalar_select %p37, %s39, %s23
      %p41 = scmp.ge.s32.totalorder %s40, 1
      %s42 = scalar_select %p41, 0, %s40
      %s43 = ssub.s32 %s23, %s42
      %s44 = ssub.s32 %s25, %s34
      %s45 = sor.u32 %s43, %s44
      %p46 = scmp.eq.s32.totalorder %s45, 0
      %s48 = sadd.s32 %s47, 1
      %s49 = scalar_select %p46, %s47, %s48
      %p52 = pneg %p46
      %p53 = scmp.eq.s32.totalorder %s16, 1
      %p54 = por %p52, %p53
      %p55 = scmp.ne.s32.totalorder %s47, %s50
      %p56 = scmp.eq.s32.totalorder %s16, 0
      %p57 = por %p55, %p56
      %p58 = scmp.ne.s32.totalorder %s47, %s50
      %p59 = scmp.eq.s32.totalorder %s21, 1
      %p60 = por %p58, %p59
      %p61 = scmp.ne.s32.totalorder %s50, %s51
      %p62 = scmp.eq.s32.totalorder %s21, 0
      %p63 = por %p61, %p62
      %p64 = scmp.ne.s32.totalorder %s50, %s51
      %p65 = scmp.eq.s32.totalorder %s22, 1
      %p66 = por %p64, %p65
      %p68 = scmp.ne.s32.totalorder %s51, %s67
      %p69 = scmp.eq.s32.totalorder %s22, 0
      %p70 = por %p68, %p69
      %s71 = ssub.s32 %s25, %s34
      %s72 = ssub.s32 %s24, %s38
      %s73 = sor.u32 %s71, %s72
      %p74 = scmp.eq.s32.totalorder %s73, 0
      %s76 = sadd.s32 %s75, 1
      %s77 = scalar_select %p74, %s75, %s76
      %p80 = pneg %p74
      %p81 = scmp.eq.s32.totalorder %s16, 1
      %p82 = por %p80, %p81
      %p83 = scmp.ne.s32.totalorder %s75, %s78
      %p84 = scmp.eq.s32.totalorder %s16, 0
      %p85 = por %p83, %p84
      %p86 = scmp.ne.s32.totalorder %s75, %s78
      %p87 = scmp.eq.s32.totalorder %s21, 1
      %p88 = por %p86, %p87
      %p89 = scmp.ne.s32.totalorder %s78, %s79
      %p90 = scmp.eq.s32.totalorder %s21, 0
      %p91 = por %p89, %p90
      %p92 = scmp.ne.s32.totalorder %s78, %s79
      %p93 = scmp.eq.s32.totalorder %s22, 1
      %p94 = por %p92, %p93
      %p96 = scmp.ne.s32.totalorder %s79, %s95
      %p97 = scmp.eq.s32.totalorder %s22, 0
      %p98 = por %p96, %p97
      %s99 = ssub.s32 %s24, %s38
      %p100 = scmp.eq.s32.totalorder %s99, 0
      %s102 = sadd.s32 %s101, 1
      %s103 = scalar_select %p100, %s101, %s102
      %p106 = pneg %p100
      %p107 = scmp.eq.s32.totalorder %s16, 1
      %p108 = por %p106, %p107
      %p109 = scmp.ne.s32.totalorder %s101, %s104
      %p110 = scmp.eq.s32.totalorder %s16, 0
      %p111 = por %p109, %p110
      %p112 = scmp.ne.s32.totalorder %s101, %s104
      %p113 = scmp.eq.s32.totalorder %s21, 1
      %p114 = por %p112, %p113
      %p115 = scmp.ne.s32.totalorder %s104, %s105
      %p116 = scmp.eq.s32.totalorder %s21, 0
      %p117 = por %p115, %p116
      %p118 = scmp.ne.s32.totalorder %s104, %s105
      %p119 = scmp.eq.s32.totalorder %s22, 1
      %p120 = por %p118, %p119
      %p122 = scmp.ne.s32.totalorder %s105, %s121
      %p123 = scmp.eq.s32.totalorder %s22, 0
      %p124 = por %p122, %p123
      %s125 = ssub.s32 %s23, %s42
      %s126 = ssub.s32 %s24, %s38
      %s127 = sor.u32 %s125, %s126
      %p128 = scmp.eq.s32.totalorder %s127, 0
      %s130 = sadd.s32 %s129, 1
      %s131 = scalar_select %p128, %s129, %s130
      %p134 = pneg %p128
      %p135 = scmp.eq.s32.totalorder %s16, 1
      %p136 = por %p134, %p135
      %p137 = scmp.ne.s32.totalorder %s129, %s132
      %p138 = scmp.eq.s32.totalorder %s16, 0
      %p139 = por %p137, %p138
      %p140 = scmp.ne.s32.totalorder %s129, %s132
      %p141 = scmp.eq.s32.totalorder %s21, 1
      %p142 = por %p140, %p141
      %p143 = scmp.ne.s32.totalorder %s132, %s133
      %p144 = scmp.eq.s32.totalorder %s21, 0
      %p145 = por %p143, %p144
      %p146 = scmp.ne.s32.totalorder %s132, %s133
      %p147 = scmp.eq.s32.totalorder %s22, 1
      %p148 = por %p146, %p147
      %p150 = scmp.ne.s32.totalorder %s133, %s149
      %p151 = scmp.eq.s32.totalorder %s22, 0
      %p152 = por %p150, %p151
      %p153 = scmp.le.s32.totalorder 1, %s16
      %p154 = scmp.lt.s32.totalorder %s16, 3
      %p155 = pnand %p153, %p154
      %p156 = pneg %p155
      // Predicated region
      $region9: #{tpu_custom_call.1} parent=5 // pred_check
        _
      $region10: #{tpu_custom_call.1} parent=5 // pred_check_branch
        %158 = sbr.rel (%p155) target = $region12
      $region11: #{tpu_custom_call.1} parent=5 // pred_region
        %s159 = ssub.s32 %s16, 1
        // Predicated region
        $region13: #{tpu_custom_call.1} parent=11 // pred_check
          %p160 = pneg %p63
        $region14: #{tpu_custom_call.1} parent=11 // pred_check_branch
          %162 = sbr.rel (%p160) target = $region16
        $region15: #{tpu_custom_call.1} parent=11 // pred_region
          %s163 = smul.u32 8, %s28
          %s165 = ssub.s32 512, 512
          %166 = vsyncadd [#allocation4], %s165
          %s167 = smul.addr %s26, 8
          %s168 = sadd.s32 %s163, %s167
          %s169 = smul.addr %s168, 64
          %s170 = scalar_lea.hbm %s0, %s169
          %s172 = sshll.u32 [#allocation3], 4
          %s173 = int_to_ptr.vmem [resolvable:$true] %s172
          %175 = dma.hbm_to_vmem [thread:$0]  %s170, 512, %s173, [#allocation4]
        $region16: #{tpu_custom_call.1} parent=11 // pred_fallthru
          _
      $region12: #{tpu_custom_call.1} parent=5 // pred_fallthru
        _
      %p176 = scmp.lt.s32.totalorder %s16, 2
      // Predicated region
      $region17: #{tpu_custom_call.1} parent=5 // pred_check
        %p177 = pneg %p176
      $region18: #{tpu_custom_call.1} parent=5 // pred_check_branch
        %179 = sbr.rel (%p177) target = $region20
      $region19: #{tpu_custom_call.1} parent=5 // pred_region
        // Predicated region
        $region21: #{tpu_custom_call.1} parent=19 // pred_check
          %p180 = pneg %p85
        $region22: #{tpu_custom_call.1} parent=19 // pred_check_branch
          %182 = sbr.rel (%p180) target = $region24
        $region23: #{tpu_custom_call.1} parent=19 // pred_region
          %s183 = sand.u32 %s16, 1
          %s184 = scalar_lea.sflag [#allocation7], %s183
          %s185 = sand.u32 %s75, 1
          %s186 = smul.addr %s185, 2048
          %s187 = scalar_lea.vmem [#allocation6], %s186
          %s188 = smul.u32 128, %s25
          %s189 = smul.u32 4, %s24
          %s191 = ssub.s32 32768, 32768
          %192 = vsyncadd %s184, %s191
          %s193 = smul.addr %s188, 8
          %s194 = sadd.s32 %s189, %s193
          %s195 = smul.addr %s194, 64
          %s196 = scalar_lea.hbm %s1, %s195
          %s197 = sshll.u32 %s187, 4
          %s198 = int_to_ptr.vmem [resolvable:$true] %s197
          %203 = dma.hbm_to_vmem [thread:$0]  %s196, 32768, %s198, %s184, 512, 256, 16
        $region24: #{tpu_custom_call.1} parent=19 // pred_fallthru
          _
        // Predicated region
        $region25: #{tpu_custom_call.1} parent=19 // pred_check
          %p204 = pneg %p111
        $region26: #{tpu_custom_call.1} parent=19 // pred_check_branch
          %206 = sbr.rel (%p204) target = $region28
        $region27: #{tpu_custom_call.1} parent=19 // pred_region
          %s207 = sand.u32 %s16, 1
          %s208 = scalar_lea.sflag [#allocation7], %s207
          %s209 = sand.u32 %s101, 1
          %s210 = smul.addr %s209, 4
          %s211 = scalar_lea.vmem [#allocation8], %s210
          %s212 = smul.u32 4, %s24
          %s214 = ssub.s32 64, 64
          %215 = vsyncadd %s208, %s214
          %s216 = smul.addr %s212, 16
          %s217 = scalar_lea.hbm %s2, %s216
          %s219 = sshll.u32 %s211, 4
          %s220 = int_to_ptr.vmem [resolvable:$true] %s219
          %222 = dma.hbm_to_vmem [thread:$0]  %s217, 64, %s220, %s208
        $region28: #{tpu_custom_call.1} parent=19 // pred_fallthru
          _
      $region20: #{tpu_custom_call.1} parent=5 // pred_fallthru
        _
      %p223 = scmp.le.s32.totalorder 1, %s16
      %p224 = scmp.lt.s32.totalorder %s16, 3
      %p225 = pnand %p223, %p224
      %p226 = pneg %p225
      // Predicated region
      $region29: #{tpu_custom_call.1} parent=5 // pred_check
        _
      $region30: #{tpu_custom_call.1} parent=5 // pred_check_branch
        %228 = sbr.rel (%p225) target = $region32
      $region31: #{tpu_custom_call.1} parent=5 // pred_region
        %s229 = ssub.s32 %s16, 1
        // Predicated region
        $region33: #{tpu_custom_call.1} parent=31 // pred_check
          %p230 = pneg %p63
        $region34: #{tpu_custom_call.1} parent=31 // pred_check_branch
          %232 = sbr.rel (%p230) target = $region36
        $region35: #{tpu_custom_call.1} parent=31 // pred_region
          %233 = dma.done [#allocation4], 512
        $region36: #{tpu_custom_call.1} parent=31 // pred_fallthru
          _
        %s234 = sand.u32 %s21, 1
        %s235 = scalar_lea.sflag [#allocation7], %s234
        %s236 = sand.u32 %s78, 1
        %s237 = smul.addr %s236, 2048
        %s238 = scalar_lea.vmem [#allocation6], %s237
        // Predicated region
        $region37: #{tpu_custom_call.1} parent=31 // pred_check
          %p239 = pneg %p91
        $region38: #{tpu_custom_call.1} parent=31 // pred_check_branch
          %241 = sbr.rel (%p239) target = $region40
        $region39: #{tpu_custom_call.1} parent=31 // pred_region
          %242 = dma.done %s235, 32768
        $region40: #{tpu_custom_call.1} parent=31 // pred_fallthru
          _
        %s243 = sand.u32 %s21, 1
        %s244 = scalar_lea.sflag [#allocation7], %s243
        %s245 = sand.u32 %s104, 1
        %s246 = smul.addr %s245, 4
        %s247 = scalar_lea.vmem [#allocation8], %s246
        // Predicated region
        $region41: #{tpu_custom_call.1} parent=31 // pred_check
          %p248 = pneg %p117
        $region42: #{tpu_custom_call.1} parent=31 // pred_check_branch
          %250 = sbr.rel (%p248) target = $region44
        $region43: #{tpu_custom_call.1} parent=31 // pred_region
          %251 = dma.done %s244, 64
        $region44: #{tpu_custom_call.1} parent=31 // pred_fallthru
          _
        %p252 = pneg %p63
        %p253 = pneg %p60
        %s254 = sand.u32 %s21, 1
        %s255 = scalar_lea.sflag [#allocation7], %s254
        %s256 = sand.u32 %s78, 1
        %s257 = smul.addr %s256, 2048
        %s258 = scalar_lea.vmem [#allocation6], %s257
        %p259 = pneg %p91
        %p260 = pneg %p88
        %s261 = sand.u32 %s21, 1
        %s262 = scalar_lea.sflag [#allocation7], %s261
        %s263 = sand.u32 %s104, 1
        %s264 = smul.addr %s263, 4
        %s265 = scalar_lea.vmem [#allocation8], %s264
        %p266 = pneg %p117
        %p267 = pneg %p114
        %p268 = pneg %p145
        %p269 = pneg %p142
        %s270 = sand.u32 %s132, 1
        %s271 = scalar_lea.sflag [#allocation5], %s270
        %s272 = sand.u32 %s132, 1
        %s273 = smul.addr %s272, 32
        %s274 = scalar_lea.vmem [#allocation9], %s273
        %s275 = smul.u32 8, %s28
        %s276 = smul.u32 128, %s28
        %s277 = smul.u32 4, %s27
        %s278 = smul.u32 4, %s27
        %s279 = smul.u32 4, %s27
        %p280 = scmp.eq.s32.totalorder %s28, 0
        // Predicated region
        $region45: #{tpu_custom_call.1} parent=31 // pred_check
          %p281 = pneg %p280
        $region46: #{tpu_custom_call.1} parent=31 // pred_check_branch
          %283 = sbr.rel (%p281) target = $region48
        $region47: #{tpu_custom_call.1} parent=31 // pred_region
          %284 = vst [vmem:[#allocation2] sm:$0xff] 0.0
          %285 = vst [vmem:[#allocation2 + $0x8] sm:$0xff] 0.0
          %286 = vst [vmem:[#allocation2 + $0x10] sm:$0xff] 0.0
          %287 = vst [vmem:[#allocation2 + $0x18] sm:$0xff] 0.0
        $region48: #{tpu_custom_call.1} parent=31 // pred_fallthru
          _
        %v288 = vld [vmem:[#allocation2] sm:$0xff]
        %v289 = vld [vmem:[#allocation2 + $0x8] sm:$0xff]
        %v290 = vld [vmem:[#allocation2 + $0x10] sm:$0xff]
        %v291 = vld [vmem:[#allocation2 + $0x18] sm:$0xff]
        %v292 = vld [vmem:[#allocation3] sm:$0xff]
        %v293 = vld [vmem:[#allocation3 + $0x8] sm:$0xff]
        %v294 = vld [vmem:[#allocation3 + $0x10] sm:$0xff]
        %v295 = vld [vmem:[#allocation3 + $0x18] sm:$0xff]
        %v296 = vld [vmem:[%s238] sm:$0xff]
        %v297 = vld [vmem:[%s238 + $0x8] sm:$0xff]
        %v298 = vld [vmem:[%s238 + $0x10] sm:$0xff]
        %v299 = vld [vmem:[%s238 + $0x18] sm:$0xff]
        %v300 = vld [vmem:[%s238 + $0x20] sm:$0xff]
        %v301 = vld [vmem:[%s238 + $0x28] sm:$0xff]
        %v302 = vld [vmem:[%s238 + $0x30] sm:$0xff]
        %v303 = vld [vmem:[%s238 + $0x38] sm:$0xff]
        %v304 = vld [vmem:[%s238 + $0x40] sm:$0xff]
        %v305 = vld [vmem:[%s238 + $0x48] sm:$0xff]
        %v306 = vld [vmem:[%s238 + $0x50] sm:$0xff]
        %v307 = vld [vmem:[%s238 + $0x58] sm:$0xff]
        %v308 = vld [vmem:[%s238 + $0x60] sm:$0xff]
        %v309 = vld [vmem:[%s238 + $0x68] sm:$0xff]
        %v310 = vld [vmem:[%s238 + $0x70] sm:$0xff]
        %v311 = vld [vmem:[%s238 + $0x78] sm:$0xff]
        %v312 = vld [vmem:[%s238 + $0x80] sm:$0xff]
        %v313 = vld [vmem:[%s238 + $0x88] sm:$0xff]
        %v314 = vld [vmem:[%s238 + $0x90] sm:$0xff]
        %v315 = vld [vmem:[%s238 + $0x98] sm:$0xff]
        %v316 = vld [vmem:[%s238 + $0xa0] sm:$0xff]
        %v317 = vld [vmem:[%s238 + $0xa8] sm:$0xff]
        %v318 = vld [vmem:[%s238 + $0xb0] sm:$0xff]
        %v319 = vld [vmem:[%s238 + $0xb8] sm:$0xff]
        %v320 = vld [vmem:[%s238 + $0xc0] sm:$0xff]
        %v321 = vld [vmem:[%s238 + $0xc8] sm:$0xff]
        %v322 = vld [vmem:[%s238 + $0xd0] sm:$0xff]
        %v323 = vld [vmem:[%s238 + $0xd8] sm:$0xff]
        %v324 = vld [vmem:[%s238 + $0xe0] sm:$0xff]
        %v325 = vld [vmem:[%s238 + $0xe8] sm:$0xff]
        %v326 = vld [vmem:[%s238 + $0xf0] sm:$0xff]
        %v327 = vld [vmem:[%s238 + $0xf8] sm:$0xff]
        %v328 = vld [vmem:[%s238 + $0x100] sm:$0xff]
        %v329 = vld [vmem:[%s238 + $0x108] sm:$0xff]
        %v330 = vld [vmem:[%s238 + $0x110] sm:$0xff]
        %v331 = vld [vmem:[%s238 + $0x118] sm:$0xff]
        %v332 = vld [vmem:[%s238 + $0x120] sm:$0xff]
        %v333 = vld [vmem:[%s238 + $0x128] sm:$0xff]
        %v334 = vld [vmem:[%s238 + $0x130] sm:$0xff]
        %v335 = vld [vmem:[%s238 + $0x138] sm:$0xff]
        %v336 = vld [vmem:[%s238 + $0x140] sm:$0xff]
        %v337 = vld [vmem:[%s238 + $0x148] sm:$0xff]
        %v338 = vld [vmem:[%s238 + $0x150] sm:$0xff]
        %v339 = vld [vmem:[%s238 + $0x158] sm:$0xff]
        %v340 = vld [vmem:[%s238 + $0x160] sm:$0xff]
        %v341 = vld [vmem:[%s238 + $0x168] sm:$0xff]
        %v342 = vld [vmem:[%s238 + $0x170] sm:$0xff]
        %v343 = vld [vmem:[%s238 + $0x178] sm:$0xff]
        %v344 = vld [vmem:[%s238 + $0x180] sm:$0xff]
        %v345 = vld [vmem:[%s238 + $0x188] sm:$0xff]
        %v346 = vld [vmem:[%s238 + $0x190] sm:$0xff]
        %v347 = vld [vmem:[%s238 + $0x198] sm:$0xff]
        %v348 = vld [vmem:[%s238 + $0x1a0] sm:$0xff]
        %v349 = vld [vmem:[%s238 + $0x1a8] sm:$0xff]
        %v350 = vld [vmem:[%s238 + $0x1b0] sm:$0xff]
        %v351 = vld [vmem:[%s238 + $0x1b8] sm:$0xff]
        %v352 = vld [vmem:[%s238 + $0x1c0] sm:$0xff]
        %v353 = vld [vmem:[%s238 + $0x1c8] sm:$0xff]
        %v354 = vld [vmem:[%s238 + $0x1d0] sm:$0xff]
        %v355 = vld [vmem:[%s238 + $0x1d8] sm:$0xff]
        %v356 = vld [vmem:[%s238 + $0x1e0] sm:$0xff]
        %v357 = vld [vmem:[%s238 + $0x1e8] sm:$0xff]
        %v358 = vld [vmem:[%s238 + $0x1f0] sm:$0xff]
        %v359 = vld [vmem:[%s238 + $0x1f8] sm:$0xff]
        %v360 = vld [vmem:[%s238 + $0x200] sm:$0xff]
        %v361 = vld [vmem:[%s238 + $0x208] sm:$0xff]
        %v362 = vld [vmem:[%s238 + $0x210] sm:$0xff]
        %v363 = vld [vmem:[%s238 + $0x218] sm:$0xff]
        %v364 = vld [vmem:[%s238 + $0x220] sm:$0xff]
        %v365 = vld [vmem:[%s238 + $0x228] sm:$0xff]
        %v366 = vld [vmem:[%s238 + $0x230] sm:$0xff]
        %v367 = vld [vmem:[%s238 + $0x238] sm:$0xff]
        %v368 = vld [vmem:[%s238 + $0x240] sm:$0xff]
        %v369 = vld [vmem:[%s238 + $0x248] sm:$0xff]
        %v370 = vld [vmem:[%s238 + $0x250] sm:$0xff]
        %v371 = vld [vmem:[%s238 + $0x258] sm:$0xff]
        %v372 = vld [vmem:[%s238 + $0x260] sm:$0xff]
        %v373 = vld [vmem:[%s238 + $0x268] sm:$0xff]
        %v374 = vld [vmem:[%s238 + $0x270] sm:$0xff]
        %v375 = vld [vmem:[%s238 + $0x278] sm:$0xff]
        %v376 = vld [vmem:[%s238 + $0x280] sm:$0xff]
        %v377 = vld [vmem:[%s238 + $0x288] sm:$0xff]
        %v378 = vld [vmem:[%s238 + $0x290] sm:$0xff]
        %v379 = vld [vmem:[%s238 + $0x298] sm:$0xff]
        %v380 = vld [vmem:[%s238 + $0x2a0] sm:$0xff]
        %v381 = vld [vmem:[%s238 + $0x2a8] sm:$0xff]
        %v382 = vld [vmem:[%s238 + $0x2b0] sm:$0xff]
        %v383 = vld [vmem:[%s238 + $0x2b8] sm:$0xff]
        %v384 = vld [vmem:[%s238 + $0x2c0] sm:$0xff]
        %v385 = vld [vmem:[%s238 + $0x2c8] sm:$0xff]
        %v386 = vld [vmem:[%s238 + $0x2d0] sm:$0xff]
        %v387 = vld [vmem:[%s238 + $0x2d8] sm:$0xff]
        %v388 = vld [vmem:[%s238 + $0x2e0] sm:$0xff]
        %v389 = vld [vmem:[%s238 + $0x2e8] sm:$0xff]
        %v390 = vld [vmem:[%s238 + $0x2f0] sm:$0xff]
        %v391 = vld [vmem:[%s238 + $0x2f8] sm:$0xff]
        %v392 = vld [vmem:[%s238 + $0x300] sm:$0xff]
        %v393 = vld [vmem:[%s238 + $0x308] sm:$0xff]
        %v394 = vld [vmem:[%s238 + $0x310] sm:$0xff]
        %v395 = vld [vmem:[%s238 + $0x318] sm:$0xff]
        %v396 = vld [vmem:[%s238 + $0x320] sm:$0xff]
        %v397 = vld [vmem:[%s238 + $0x328] sm:$0xff]
        %v398 = vld [vmem:[%s238 + $0x330] sm:$0xff]
        %v399 = vld [vmem:[%s238 + $0x338] sm:$0xff]
        %v400 = vld [vmem:[%s238 + $0x340] sm:$0xff]
        %v401 = vld [vmem:[%s238 + $0x348] sm:$0xff]
        %v402 = vld [vmem:[%s238 + $0x350] sm:$0xff]
        %v403 = vld [vmem:[%s238 + $0x358] sm:$0xff]
        %v404 = vld [vmem:[%s238 + $0x360] sm:$0xff]
        %v405 = vld [vmem:[%s238 + $0x368] sm:$0xff]
        %v406 = vld [vmem:[%s238 + $0x370] sm:$0xff]
        %v407 = vld [vmem:[%s238 + $0x378] sm:$0xff]
        %v408 = vld [vmem:[%s238 + $0x380] sm:$0xff]
        %v409 = vld [vmem:[%s238 + $0x388] sm:$0xff]
        %v410 = vld [vmem:[%s238 + $0x390] sm:$0xff]
        %v411 = vld [vmem:[%s238 + $0x398] sm:$0xff]
        %v412 = vld [vmem:[%s238 + $0x3a0] sm:$0xff]
        %v413 = vld [vmem:[%s238 + $0x3a8] sm:$0xff]
        %v414 = vld [vmem:[%s238 + $0x3b0] sm:$0xff]
        %v415 = vld [vmem:[%s238 + $0x3b8] sm:$0xff]
        %v416 = vld [vmem:[%s238 + $0x3c0] sm:$0xff]
        %v417 = vld [vmem:[%s238 + $0x3c8] sm:$0xff]
        %v418 = vld [vmem:[%s238 + $0x3d0] sm:$0xff]
        %v419 = vld [vmem:[%s238 + $0x3d8] sm:$0xff]
        %v420 = vld [vmem:[%s238 + $0x3e0] sm:$0xff]
        %v421 = vld [vmem:[%s238 + $0x3e8] sm:$0xff]
        %v422 = vld [vmem:[%s238 + $0x3f0] sm:$0xff]
        %v423 = vld [vmem:[%s238 + $0x3f8] sm:$0xff]
        %v424 = vld [vmem:[%s238 + $0x400] sm:$0xff]
        %v425 = vld [vmem:[%s238 + $0x408] sm:$0xff]
        %v426 = vld [vmem:[%s238 + $0x410] sm:$0xff]
        %v427 = vld [vmem:[%s238 + $0x418] sm:$0xff]
        %v428 = vld [vmem:[%s238 + $0x420] sm:$0xff]
        %v429 = vld [vmem:[%s238 + $0x428] sm:$0xff]
        %v430 = vld [vmem:[%s238 + $0x430] sm:$0xff]
        %v431 = vld [vmem:[%s238 + $0x438] sm:$0xff]
        %v432 = vld [vmem:[%s238 + $0x440] sm:$0xff]
        %v433 = vld [vmem:[%s238 + $0x448] sm:$0xff]
        %v434 = vld [vmem:[%s238 + $0x450] sm:$0xff]
        %v435 = vld [vmem:[%s238 + $0x458] sm:$0xff]
        %v436 = vld [vmem:[%s238 + $0x460] sm:$0xff]
        %v437 = vld [vmem:[%s238 + $0x468] sm:$0xff]
        %v438 = vld [vmem:[%s238 + $0x470] sm:$0xff]
        %v439 = vld [vmem:[%s238 + $0x478] sm:$0xff]
        %v440 = vld [vmem:[%s238 + $0x480] sm:$0xff]
        %v441 = vld [vmem:[%s238 + $0x488] sm:$0xff]
        %v442 = vld [vmem:[%s238 + $0x490] sm:$0xff]
        %v443 = vld [vmem:[%s238 + $0x498] sm:$0xff]
        %v444 = vld [vmem:[%s238 + $0x4a0] sm:$0xff]
        %v445 = vld [vmem:[%s238 + $0x4a8] sm:$0xff]
        %v446 = vld [vmem:[%s238 + $0x4b0] sm:$0xff]
        %v447 = vld [vmem:[%s238 + $0x4b8] sm:$0xff]
        %v448 = vld [vmem:[%s238 + $0x4c0] sm:$0xff]
        %v449 = vld [vmem:[%s238 + $0x4c8] sm:$0xff]
        %v450 = vld [vmem:[%s238 + $0x4d0] sm:$0xff]
        %v451 = vld [vmem:[%s238 + $0x4d8] sm:$0xff]
        %v452 = vld [vmem:[%s238 + $0x4e0] sm:$0xff]
        %v453 = vld [vmem:[%s238 + $0x4e8] sm:$0xff]
        %v454 = vld [vmem:[%s238 + $0x4f0] sm:$0xff]
        %v455 = vld [vmem:[%s238 + $0x4f8] sm:$0xff]
        %v456 = vld [vmem:[%s238 + $0x500] sm:$0xff]
        %v457 = vld [vmem:[%s238 + $0x508] sm:$0xff]
        %v458 = vld [vmem:[%s238 + $0x510] sm:$0xff]
        %v459 = vld [vmem:[%s238 + $0x518] sm:$0xff]
        %v460 = vld [vmem:[%s238 + $0x520] sm:$0xff]
        %v461 = vld [vmem:[%s238 + $0x528] sm:$0xff]
        %v462 = vld [vmem:[%s238 + $0x530] sm:$0xff]
        %v463 = vld [vmem:[%s238 + $0x538] sm:$0xff]
        %v464 = vld [vmem:[%s238 + $0x540] sm:$0xff]
        %v465 = vld [vmem:[%s238 + $0x548] sm:$0xff]
        %v466 = vld [vmem:[%s238 + $0x550] sm:$0xff]
        %v467 = vld [vmem:[%s238 + $0x558] sm:$0xff]
        %v468 = vld [vmem:[%s238 + $0x560] sm:$0xff]
        %v469 = vld [vmem:[%s238 + $0x568] sm:$0xff]
        %v470 = vld [vmem:[%s238 + $0x570] sm:$0xff]
        %v471 = vld [vmem:[%s238 + $0x578] sm:$0xff]
        %v472 = vld [vmem:[%s238 + $0x580] sm:$0xff]
        %v473 = vld [vmem:[%s238 + $0x588] sm:$0xff]
        %v474 = vld [vmem:[%s238 + $0x590] sm:$0xff]
        %v475 = vld [vmem:[%s238 + $0x598] sm:$0xff]
        %v476 = vld [vmem:[%s238 + $0x5a0] sm:$0xff]
        %v477 = vld [vmem:[%s238 + $0x5a8] sm:$0xff]
        %v478 = vld [vmem:[%s238 + $0x5b0] sm:$0xff]
        %v479 = vld [vmem:[%s238 + $0x5b8] sm:$0xff]
        %v480 = vld [vmem:[%s238 + $0x5c0] sm:$0xff]
        %v481 = vld [vmem:[%s238 + $0x5c8] sm:$0xff]
        %v482 = vld [vmem:[%s238 + $0x5d0] sm:$0xff]
        %v483 = vld [vmem:[%s238 + $0x5d8] sm:$0xff]
        %v484 = vld [vmem:[%s238 + $0x5e0] sm:$0xff]
        %v485 = vld [vmem:[%s238 + $0x5e8] sm:$0xff]
        %v486 = vld [vmem:[%s238 + $0x5f0] sm:$0xff]
        %v487 = vld [vmem:[%s238 + $0x5f8] sm:$0xff]
        %v488 = vld [vmem:[%s238 + $0x600] sm:$0xff]
        %v489 = vld [vmem:[%s238 + $0x608] sm:$0xff]
        %v490 = vld [vmem:[%s238 + $0x610] sm:$0xff]
        %v491 = vld [vmem:[%s238 + $0x618] sm:$0xff]
        %v492 = vld [vmem:[%s238 + $0x620] sm:$0xff]
        %v493 = vld [vmem:[%s238 + $0x628] sm:$0xff]
        %v494 = vld [vmem:[%s238 + $0x630] sm:$0xff]
        %v495 = vld [vmem:[%s238 + $0x638] sm:$0xff]
        %v496 = vld [vmem:[%s238 + $0x640] sm:$0xff]
        %v497 = vld [vmem:[%s238 + $0x648] sm:$0xff]
        %v498 = vld [vmem:[%s238 + $0x650] sm:$0xff]
        %v499 = vld [vmem:[%s238 + $0x658] sm:$0xff]
        %v500 = vld [vmem:[%s238 + $0x660] sm:$0xff]
        %v501 = vld [vmem:[%s238 + $0x668] sm:$0xff]
        %v502 = vld [vmem:[%s238 + $0x670] sm:$0xff]
        %v503 = vld [vmem:[%s238 + $0x678] sm:$0xff]
        %v504 = vld [vmem:[%s238 + $0x680] sm:$0xff]
        %v505 = vld [vmem:[%s238 + $0x688] sm:$0xff]
        %v506 = vld [vmem:[%s238 + $0x690] sm:$0xff]
        %v507 = vld [vmem:[%s238 + $0x698] sm:$0xff]
        %v508 = vld [vmem:[%s238 + $0x6a0] sm:$0xff]
        %v509 = vld [vmem:[%s238 + $0x6a8] sm:$0xff]
        %v510 = vld [vmem:[%s238 + $0x6b0] sm:$0xff]
        %v511 = vld [vmem:[%s238 + $0x6b8] sm:$0xff]
        %v512 = vld [vmem:[%s238 + $0x6c0] sm:$0xff]
        %v513 = vld [vmem:[%s238 + $0x6c8] sm:$0xff]
        %v514 = vld [vmem:[%s238 + $0x6d0] sm:$0xff]
        %v515 = vld [vmem:[%s238 + $0x6d8] sm:$0xff]
        %v516 = vld [vmem:[%s238 + $0x6e0] sm:$0xff]
        %v517 = vld [vmem:[%s238 + $0x6e8] sm:$0xff]
        %v518 = vld [vmem:[%s238 + $0x6f0] sm:$0xff]
        %v519 = vld [vmem:[%s238 + $0x6f8] sm:$0xff]
        %v520 = vld [vmem:[%s238 + $0x700] sm:$0xff]
        %v521 = vld [vmem:[%s238 + $0x708] sm:$0xff]
        %v522 = vld [vmem:[%s238 + $0x710] sm:$0xff]
        %v523 = vld [vmem:[%s238 + $0x718] sm:$0xff]
        %v524 = vld [vmem:[%s238 + $0x720] sm:$0xff]
        %v525 = vld [vmem:[%s238 + $0x728] sm:$0xff]
        %v526 = vld [vmem:[%s238 + $0x730] sm:$0xff]
        %v527 = vld [vmem:[%s238 + $0x738] sm:$0xff]
        %v528 = vld [vmem:[%s238 + $0x740] sm:$0xff]
        %v529 = vld [vmem:[%s238 + $0x748] sm:$0xff]
        %v530 = vld [vmem:[%s238 + $0x750] sm:$0xff]
        %v531 = vld [vmem:[%s238 + $0x758] sm:$0xff]
        %v532 = vld [vmem:[%s238 + $0x760] sm:$0xff]
        %v533 = vld [vmem:[%s238 + $0x768] sm:$0xff]
        %v534 = vld [vmem:[%s238 + $0x770] sm:$0xff]
        %v535 = vld [vmem:[%s238 + $0x778] sm:$0xff]
        %v536 = vld [vmem:[%s238 + $0x780] sm:$0xff]
        %v537 = vld [vmem:[%s238 + $0x788] sm:$0xff]
        %v538 = vld [vmem:[%s238 + $0x790] sm:$0xff]
        %v539 = vld [vmem:[%s238 + $0x798] sm:$0xff]
        %v540 = vld [vmem:[%s238 + $0x7a0] sm:$0xff]
        %v541 = vld [vmem:[%s238 + $0x7a8] sm:$0xff]
        %v542 = vld [vmem:[%s238 + $0x7b0] sm:$0xff]
        %v543 = vld [vmem:[%s238 + $0x7b8] sm:$0xff]
        %v544 = vld [vmem:[%s238 + $0x7c0] sm:$0xff]
        %v545 = vld [vmem:[%s238 + $0x7c8] sm:$0xff]
        %v546 = vld [vmem:[%s238 + $0x7d0] sm:$0xff]
        %v547 = vld [vmem:[%s238 + $0x7d8] sm:$0xff]
        %v548 = vld [vmem:[%s238 + $0x7e0] sm:$0xff]
        %v549 = vld [vmem:[%s238 + $0x7e8] sm:$0xff]
        %v550 = vld [vmem:[%s238 + $0x7f0] sm:$0xff]
        %v551 = vld [vmem:[%s238 + $0x7f8] sm:$0xff]
        %v556 = vunpack.c.l.b16 %v292
        %v557 = vunpack.c.h.b16 %v292
        %v558 = vunpack.c.l.b16 %v293
        %v559 = vunpack.c.h.b16 %v293
        %v560 = vunpack.c.l.b16 %v294
        %v561 = vunpack.c.h.b16 %v294
        %v562 = vunpack.c.l.b16 %v295
        %v563 = vunpack.c.h.b16 %v295
        %v564 = vpack.c.b16 %v556, %v556
        %v565 = vpack.c.b16 %v557, %v557
        %v566 = vpack.c.b16 %v558, %v558
        %v567 = vpack.c.b16 %v559, %v559
        %v568 = vpack.c.b16 %v560, %v560
        %v569 = vpack.c.b16 %v561, %v561
        %v570 = vpack.c.b16 %v562, %v562
        %v571 = vpack.c.b16 %v563, %v563
        %v836 = vunpack.c.l.b16 %v296
        %v837 = vunpack.c.h.b16 %v296
        %v838 = vunpack.c.l.b16 %v297
        %v839 = vunpack.c.h.b16 %v297
        %v840 = vunpack.c.l.b16 %v298
        %v841 = vunpack.c.h.b16 %v298
        %v842 = vunpack.c.l.b16 %v299
        %v843 = vunpack.c.h.b16 %v299
        %v844 = vunpack.c.l.b16 %v300
        %v845 = vunpack.c.h.b16 %v300
        %v846 = vunpack.c.l.b16 %v301
        %v847 = vunpack.c.h.b16 %v301
        %v848 = vunpack.c.l.b16 %v302
        %v849 = vunpack.c.h.b16 %v302
        %v850 = vunpack.c.l.b16 %v303
        %v851 = vunpack.c.h.b16 %v303
        %v852 = vunpack.c.l.b16 %v304
        %v853 = vunpack.c.h.b16 %v304
        %v854 = vunpack.c.l.b16 %v305
        %v855 = vunpack.c.h.b16 %v305
        %v856 = vunpack.c.l.b16 %v306
        %v857 = vunpack.c.h.b16 %v306
        %v858 = vunpack.c.l.b16 %v307
        %v859 = vunpack.c.h.b16 %v307
        %v860 = vunpack.c.l.b16 %v308
        %v861 = vunpack.c.h.b16 %v308
        %v862 = vunpack.c.l.b16 %v309
        %v863 = vunpack.c.h.b16 %v309
        %v864 = vunpack.c.l.b16 %v310
        %v865 = vunpack.c.h.b16 %v310
        %v866 = vunpack.c.l.b16 %v311
        %v867 = vunpack.c.h.b16 %v311
        %v868 = vunpack.c.l.b16 %v312
        %v869 = vunpack.c.h.b16 %v312
        %v870 = vunpack.c.l.b16 %v313
        %v871 = vunpack.c.h.b16 %v313
        %v872 = vunpack.c.l.b16 %v314
        %v873 = vunpack.c.h.b16 %v314
        %v874 = vunpack.c.l.b16 %v315
        %v875 = vunpack.c.h.b16 %v315
        %v876 = vunpack.c.l.b16 %v316
        %v877 = vunpack.c.h.b16 %v316
        %v878 = vunpack.c.l.b16 %v317
        %v879 = vunpack.c.h.b16 %v317
        %v880 = vunpack.c.l.b16 %v318
        %v881 = vunpack.c.h.b16 %v318
        %v882 = vunpack.c.l.b16 %v319
        %v883 = vunpack.c.h.b16 %v319
        %v884 = vunpack.c.l.b16 %v320
        %v885 = vunpack.c.h.b16 %v320
        %v886 = vunpack.c.l.b16 %v321
        %v887 = vunpack.c.h.b16 %v321
        %v888 = vunpack.c.l.b16 %v322
        %v889 = vunpack.c.h.b16 %v322
        %v890 = vunpack.c.l.b16 %v323
        %v891 = vunpack.c.h.b16 %v323
        %v892 = vunpack.c.l.b16 %v324
        %v893 = vunpack.c.h.b16 %v324
        %v894 = vunpack.c.l.b16 %v325
        %v895 = vunpack.c.h.b16 %v325
        %v896 = vunpack.c.l.b16 %v326
        %v897 = vunpack.c.h.b16 %v326
        %v898 = vunpack.c.l.b16 %v327
        %v899 = vunpack.c.h.b16 %v327
        %v900 = vunpack.c.l.b16 %v328
        %v901 = vunpack.c.h.b16 %v328
        %v902 = vunpack.c.l.b16 %v329
        %v903 = vunpack.c.h.b16 %v329
        %v904 = vunpack.c.l.b16 %v330
        %v905 = vunpack.c.h.b16 %v330
        %v906 = vunpack.c.l.b16 %v331
        %v907 = vunpack.c.h.b16 %v331
        %v908 = vunpack.c.l.b16 %v332
        %v909 = vunpack.c.h.b16 %v332
        %v910 = vunpack.c.l.b16 %v333
        %v911 = vunpack.c.h.b16 %v333
        %v912 = vunpack.c.l.b16 %v334
        %v913 = vunpack.c.h.b16 %v334
        %v914 = vunpack.c.l.b16 %v335
        %v915 = vunpack.c.h.b16 %v335
        %v916 = vunpack.c.l.b16 %v336
        %v917 = vunpack.c.h.b16 %v336
        %v918 = vunpack.c.l.b16 %v337
        %v919 = vunpack.c.h.b16 %v337
        %v920 = vunpack.c.l.b16 %v338
        %v921 = vunpack.c.h.b16 %v338
        %v922 = vunpack.c.l.b16 %v339
        %v923 = vunpack.c.h.b16 %v339
        %v924 = vunpack.c.l.b16 %v340
        %v925 = vunpack.c.h.b16 %v340
        %v926 = vunpack.c.l.b16 %v341
        %v927 = vunpack.c.h.b16 %v341
        %v928 = vunpack.c.l.b16 %v342
        %v929 = vunpack.c.h.b16 %v342
        %v930 = vunpack.c.l.b16 %v343
        %v931 = vunpack.c.h.b16 %v343
        %v932 = vunpack.c.l.b16 %v344
        %v933 = vunpack.c.h.b16 %v344
        %v934 = vunpack.c.l.b16 %v345
        %v935 = vunpack.c.h.b16 %v345
        %v936 = vunpack.c.l.b16 %v346
        %v937 = vunpack.c.h.b16 %v346
        %v938 = vunpack.c.l.b16 %v347
        %v939 = vunpack.c.h.b16 %v347
        %v940 = vunpack.c.l.b16 %v348
        %v941 = vunpack.c.h.b16 %v348
        %v942 = vunpack.c.l.b16 %v349
        %v943 = vunpack.c.h.b16 %v349
        %v944 = vunpack.c.l.b16 %v350
        %v945 = vunpack.c.h.b16 %v350
        %v946 = vunpack.c.l.b16 %v351
        %v947 = vunpack.c.h.b16 %v351
        %v948 = vunpack.c.l.b16 %v352
        %v949 = vunpack.c.h.b16 %v352
        %v950 = vunpack.c.l.b16 %v353
        %v951 = vunpack.c.h.b16 %v353
        %v952 = vunpack.c.l.b16 %v354
        %v953 = vunpack.c.h.b16 %v354
        %v954 = vunpack.c.l.b16 %v355
        %v955 = vunpack.c.h.b16 %v355
        %v956 = vunpack.c.l.b16 %v356
        %v957 = vunpack.c.h.b16 %v356
        %v958 = vunpack.c.l.b16 %v357
        %v959 = vunpack.c.h.b16 %v357
        %v960 = vunpack.c.l.b16 %v358
        %v961 = vunpack.c.h.b16 %v358
        %v962 = vunpack.c.l.b16 %v359
        %v963 = vunpack.c.h.b16 %v359
        %v964 = vunpack.c.l.b16 %v360
        %v965 = vunpack.c.h.b16 %v360
        %v966 = vunpack.c.l.b16 %v361
        %v967 = vunpack.c.h.b16 %v361
        %v968 = vunpack.c.l.b16 %v362
        %v969 = vunpack.c.h.b16 %v362
        %v970 = vunpack.c.l.b16 %v363
        %v971 = vunpack.c.h.b16 %v363
        %v972 = vunpack.c.l.b16 %v364
        %v973 = vunpack.c.h.b16 %v364
        %v974 = vunpack.c.l.b16 %v365
        %v975 = vunpack.c.h.b16 %v365
        %v976 = vunpack.c.l.b16 %v366
        %v977 = vunpack.c.h.b16 %v366
        %v978 = vunpack.c.l.b16 %v367
        %v979 = vunpack.c.h.b16 %v367
        %v980 = vunpack.c.l.b16 %v368
        %v981 = vunpack.c.h.b16 %v368
        %v982 = vunpack.c.l.b16 %v369
        %v983 = vunpack.c.h.b16 %v369
        %v984 = vunpack.c.l.b16 %v370
        %v985 = vunpack.c.h.b16 %v370
        %v986 = vunpack.c.l.b16 %v371
        %v987 = vunpack.c.h.b16 %v371
        %v988 = vunpack.c.l.b16 %v372
        %v989 = vunpack.c.h.b16 %v372
        %v990 = vunpack.c.l.b16 %v373
        %v991 = vunpack.c.h.b16 %v373
        %v992 = vunpack.c.l.b16 %v374
        %v993 = vunpack.c.h.b16 %v374
        %v994 = vunpack.c.l.b16 %v375
        %v995 = vunpack.c.h.b16 %v375
        %v996 = vunpack.c.l.b16 %v376
        %v997 = vunpack.c.h.b16 %v376
        %v998 = vunpack.c.l.b16 %v377
        %v999 = vunpack.c.h.b16 %v377
        %v1000 = vunpack.c.l.b16 %v378
        %v1001 = vunpack.c.h.b16 %v378
        %v1002 = vunpack.c.l.b16 %v379
        %v1003 = vunpack.c.h.b16 %v379
        %v1004 = vunpack.c.l.b16 %v380
        %v1005 = vunpack.c.h.b16 %v380
        %v1006 = vunpack.c.l.b16 %v381
        %v1007 = vunpack.c.h.b16 %v381
        %v1008 = vunpack.c.l.b16 %v382
        %v1009 = vunpack.c.h.b16 %v382
        %v1010 = vunpack.c.l.b16 %v383
        %v1011 = vunpack.c.h.b16 %v383
        %v1012 = vunpack.c.l.b16 %v384
        %v1013 = vunpack.c.h.b16 %v384
        %v1014 = vunpack.c.l.b16 %v385
        %v1015 = vunpack.c.h.b16 %v385
        %v1016 = vunpack.c.l.b16 %v386
        %v1017 = vunpack.c.h.b16 %v386
        %v1018 = vunpack.c.l.b16 %v387
        %v1019 = vunpack.c.h.b16 %v387
        %v1020 = vunpack.c.l.b16 %v388
        %v1021 = vunpack.c.h.b16 %v388
        %v1022 = vunpack.c.l.b16 %v389
        %v1023 = vunpack.c.h.b16 %v389
        %v1024 = vunpack.c.l.b16 %v390
        %v1025 = vunpack.c.h.b16 %v390
        %v1026 = vunpack.c.l.b16 %v391
        %v1027 = vunpack.c.h.b16 %v391
        %v1028 = vunpack.c.l.b16 %v392
        %v1029 = vunpack.c.h.b16 %v392
        %v1030 = vunpack.c.l.b16 %v393
        %v1031 = vunpack.c.h.b16 %v393
        %v1032 = vunpack.c.l.b16 %v394
        %v1033 = vunpack.c.h.b16 %v394
        %v1034 = vunpack.c.l.b16 %v395
        %v1035 = vunpack.c.h.b16 %v395
        %v1036 = vunpack.c.l.b16 %v396
        %v1037 = vunpack.c.h.b16 %v396
        %v1038 = vunpack.c.l.b16 %v397
        %v1039 = vunpack.c.h.b16 %v397
        %v1040 = vunpack.c.l.b16 %v398
        %v1041 = vunpack.c.h.b16 %v398
        %v1042 = vunpack.c.l.b16 %v399
        %v1043 = vunpack.c.h.b16 %v399
        %v1044 = vunpack.c.l.b16 %v400
        %v1045 = vunpack.c.h.b16 %v400
        %v1046 = vunpack.c.l.b16 %v401
        %v1047 = vunpack.c.h.b16 %v401
        %v1048 = vunpack.c.l.b16 %v402
        %v1049 = vunpack.c.h.b16 %v402
        %v1050 = vunpack.c.l.b16 %v403
        %v1051 = vunpack.c.h.b16 %v403
        %v1052 = vunpack.c.l.b16 %v404
        %v1053 = vunpack.c.h.b16 %v404
        %v1054 = vunpack.c.l.b16 %v405
        %v1055 = vunpack.c.h.b16 %v405
        %v1056 = vunpack.c.l.b16 %v406
        %v1057 = vunpack.c.h.b16 %v406
        %v1058 = vunpack.c.l.b16 %v407
        %v1059 = vunpack.c.h.b16 %v407
        %v1060 = vunpack.c.l.b16 %v408
        %v1061 = vunpack.c.h.b16 %v408
        %v1062 = vunpack.c.l.b16 %v409
        %v1063 = vunpack.c.h.b16 %v409
        %v1064 = vunpack.c.l.b16 %v410
        %v1065 = vunpack.c.h.b16 %v410
        %v1066 = vunpack.c.l.b16 %v411
        %v1067 = vunpack.c.h.b16 %v411
        %v1068 = vunpack.c.l.b16 %v412
        %v1069 = vunpack.c.h.b16 %v412
        %v1070 = vunpack.c.l.b16 %v413
        %v1071 = vunpack.c.h.b16 %v413
        %v1072 = vunpack.c.l.b16 %v414
        %v1073 = vunpack.c.h.b16 %v414
        %v1074 = vunpack.c.l.b16 %v415
        %v1075 = vunpack.c.h.b16 %v415
        %v1076 = vunpack.c.l.b16 %v416
        %v1077 = vunpack.c.h.b16 %v416
        %v1078 = vunpack.c.l.b16 %v417
        %v1079 = vunpack.c.h.b16 %v417
        %v1080 = vunpack.c.l.b16 %v418
        %v1081 = vunpack.c.h.b16 %v418
        %v1082 = vunpack.c.l.b16 %v419
        %v1083 = vunpack.c.h.b16 %v419
        %v1084 = vunpack.c.l.b16 %v420
        %v1085 = vunpack.c.h.b16 %v420
        %v1086 = vunpack.c.l.b16 %v421
        %v1087 = vunpack.c.h.b16 %v421
        %v1088 = vunpack.c.l.b16 %v422
        %v1089 = vunpack.c.h.b16 %v422
        %v1090 = vunpack.c.l.b16 %v423
        %v1091 = vunpack.c.h.b16 %v423
        %v1092 = vunpack.c.l.b16 %v424
        %v1093 = vunpack.c.h.b16 %v424
        %v1094 = vunpack.c.l.b16 %v425
        %v1095 = vunpack.c.h.b16 %v425
        %v1096 = vunpack.c.l.b16 %v426
        %v1097 = vunpack.c.h.b16 %v426
        %v1098 = vunpack.c.l.b16 %v427
        %v1099 = vunpack.c.h.b16 %v427
        %v1100 = vunpack.c.l.b16 %v428
        %v1101 = vunpack.c.h.b16 %v428
        %v1102 = vunpack.c.l.b16 %v429
        %v1103 = vunpack.c.h.b16 %v429
        %v1104 = vunpack.c.l.b16 %v430
        %v1105 = vunpack.c.h.b16 %v430
        %v1106 = vunpack.c.l.b16 %v431
        %v1107 = vunpack.c.h.b16 %v431
        %v1108 = vunpack.c.l.b16 %v432
        %v1109 = vunpack.c.h.b16 %v432
        %v1110 = vunpack.c.l.b16 %v433
        %v1111 = vunpack.c.h.b16 %v433
        %v1112 = vunpack.c.l.b16 %v434
        %v1113 = vunpack.c.h.b16 %v434
        %v1114 = vunpack.c.l.b16 %v435
        %v1115 = vunpack.c.h.b16 %v435
        %v1116 = vunpack.c.l.b16 %v436
        %v1117 = vunpack.c.h.b16 %v436
        %v1118 = vunpack.c.l.b16 %v437
        %v1119 = vunpack.c.h.b16 %v437
        %v1120 = vunpack.c.l.b16 %v438
        %v1121 = vunpack.c.h.b16 %v438
        %v1122 = vunpack.c.l.b16 %v439
        %v1123 = vunpack.c.h.b16 %v439
        %v1124 = vunpack.c.l.b16 %v440
        %v1125 = vunpack.c.h.b16 %v440
        %v1126 = vunpack.c.l.b16 %v441
        %v1127 = vunpack.c.h.b16 %v441
        %v1128 = vunpack.c.l.b16 %v442
        %v1129 = vunpack.c.h.b16 %v442
        %v1130 = vunpack.c.l.b16 %v443
        %v1131 = vunpack.c.h.b16 %v443
        %v1132 = vunpack.c.l.b16 %v444
        %v1133 = vunpack.c.h.b16 %v444
        %v1134 = vunpack.c.l.b16 %v445
        %v1135 = vunpack.c.h.b16 %v445
        %v1136 = vunpack.c.l.b16 %v446
        %v1137 = vunpack.c.h.b16 %v446
        %v1138 = vunpack.c.l.b16 %v447
        %v1139 = vunpack.c.h.b16 %v447
        %v1140 = vunpack.c.l.b16 %v448
        %v1141 = vunpack.c.h.b16 %v448
        %v1142 = vunpack.c.l.b16 %v449
        %v1143 = vunpack.c.h.b16 %v449
        %v1144 = vunpack.c.l.b16 %v450
        %v1145 = vunpack.c.h.b16 %v450
        %v1146 = vunpack.c.l.b16 %v451
        %v1147 = vunpack.c.h.b16 %v451
        %v1148 = vunpack.c.l.b16 %v452
        %v1149 = vunpack.c.h.b16 %v452
        %v1150 = vunpack.c.l.b16 %v453
        %v1151 = vunpack.c.h.b16 %v453
        %v1152 = vunpack.c.l.b16 %v454
        %v1153 = vunpack.c.h.b16 %v454
        %v1154 = vunpack.c.l.b16 %v455
        %v1155 = vunpack.c.h.b16 %v455
        %v1156 = vunpack.c.l.b16 %v456
        %v1157 = vunpack.c.h.b16 %v456
        %v1158 = vunpack.c.l.b16 %v457
        %v1159 = vunpack.c.h.b16 %v457
        %v1160 = vunpack.c.l.b16 %v458
        %v1161 = vunpack.c.h.b16 %v458
        %v1162 = vunpack.c.l.b16 %v459
        %v1163 = vunpack.c.h.b16 %v459
        %v1164 = vunpack.c.l.b16 %v460
        %v1165 = vunpack.c.h.b16 %v460
        %v1166 = vunpack.c.l.b16 %v461
        %v1167 = vunpack.c.h.b16 %v461
        %v1168 = vunpack.c.l.b16 %v462
        %v1169 = vunpack.c.h.b16 %v462
        %v1170 = vunpack.c.l.b16 %v463
        %v1171 = vunpack.c.h.b16 %v463
        %v1172 = vunpack.c.l.b16 %v464
        %v1173 = vunpack.c.h.b16 %v464
        %v1174 = vunpack.c.l.b16 %v465
        %v1175 = vunpack.c.h.b16 %v465
        %v1176 = vunpack.c.l.b16 %v466
        %v1177 = vunpack.c.h.b16 %v466
        %v1178 = vunpack.c.l.b16 %v467
        %v1179 = vunpack.c.h.b16 %v467
        %v1180 = vunpack.c.l.b16 %v468
        %v1181 = vunpack.c.h.b16 %v468
        %v1182 = vunpack.c.l.b16 %v469
        %v1183 = vunpack.c.h.b16 %v469
        %v1184 = vunpack.c.l.b16 %v470
        %v1185 = vunpack.c.h.b16 %v470
        %v1186 = vunpack.c.l.b16 %v471
        %v1187 = vunpack.c.h.b16 %v471
        %v1188 = vunpack.c.l.b16 %v472
        %v1189 = vunpack.c.h.b16 %v472
        %v1190 = vunpack.c.l.b16 %v473
        %v1191 = vunpack.c.h.b16 %v473
        %v1192 = vunpack.c.l.b16 %v474
        %v1193 = vunpack.c.h.b16 %v474
        %v1194 = vunpack.c.l.b16 %v475
        %v1195 = vunpack.c.h.b16 %v475
        %v1196 = vunpack.c.l.b16 %v476
        %v1197 = vunpack.c.h.b16 %v476
        %v1198 = vunpack.c.l.b16 %v477
        %v1199 = vunpack.c.h.b16 %v477
        %v1200 = vunpack.c.l.b16 %v478
        %v1201 = vunpack.c.h.b16 %v478
        %v1202 = vunpack.c.l.b16 %v479
        %v1203 = vunpack.c.h.b16 %v479
        %v1204 = vunpack.c.l.b16 %v480
        %v1205 = vunpack.c.h.b16 %v480
        %v1206 = vunpack.c.l.b16 %v481
        %v1207 = vunpack.c.h.b16 %v481
        %v1208 = vunpack.c.l.b16 %v482
        %v1209 = vunpack.c.h.b16 %v482
        %v1210 = vunpack.c.l.b16 %v483
        %v1211 = vunpack.c.h.b16 %v483
        %v1212 = vunpack.c.l.b16 %v484
        %v1213 = vunpack.c.h.b16 %v484
        %v1214 = vunpack.c.l.b16 %v485
        %v1215 = vunpack.c.h.b16 %v485
        %v1216 = vunpack.c.l.b16 %v486
        %v1217 = vunpack.c.h.b16 %v486
        %v1218 = vunpack.c.l.b16 %v487
        %v1219 = vunpack.c.h.b16 %v487
        %v1220 = vunpack.c.l.b16 %v488
        %v1221 = vunpack.c.h.b16 %v488
        %v1222 = vunpack.c.l.b16 %v489
        %v1223 = vunpack.c.h.b16 %v489
        %v1224 = vunpack.c.l.b16 %v490
        %v1225 = vunpack.c.h.b16 %v490
        %v1226 = vunpack.c.l.b16 %v491
        %v1227 = vunpack.c.h.b16 %v491
        %v1228 = vunpack.c.l.b16 %v492
        %v1229 = vunpack.c.h.b16 %v492
        %v1230 = vunpack.c.l.b16 %v493
        %v1231 = vunpack.c.h.b16 %v493
        %v1232 = vunpack.c.l.b16 %v494
        %v1233 = vunpack.c.h.b16 %v494
        %v1234 = vunpack.c.l.b16 %v495
        %v1235 = vunpack.c.h.b16 %v495
        %v1236 = vunpack.c.l.b16 %v496
        %v1237 = vunpack.c.h.b16 %v496
        %v1238 = vunpack.c.l.b16 %v497
        %v1239 = vunpack.c.h.b16 %v497
        %v1240 = vunpack.c.l.b16 %v498
        %v1241 = vunpack.c.h.b16 %v498
        %v1242 = vunpack.c.l.b16 %v499
        %v1243 = vunpack.c.h.b16 %v499
        %v1244 = vunpack.c.l.b16 %v500
        %v1245 = vunpack.c.h.b16 %v500
        %v1246 = vunpack.c.l.b16 %v501
        %v1247 = vunpack.c.h.b16 %v501
        %v1248 = vunpack.c.l.b16 %v502
        %v1249 = vunpack.c.h.b16 %v502
        %v1250 = vunpack.c.l.b16 %v503
        %v1251 = vunpack.c.h.b16 %v503
        %v1252 = vunpack.c.l.b16 %v504
        %v1253 = vunpack.c.h.b16 %v504
        %v1254 = vunpack.c.l.b16 %v505
        %v1255 = vunpack.c.h.b16 %v505
        %v1256 = vunpack.c.l.b16 %v506
        %v1257 = vunpack.c.h.b16 %v506
        %v1258 = vunpack.c.l.b16 %v507
        %v1259 = vunpack.c.h.b16 %v507
        %v1260 = vunpack.c.l.b16 %v508
        %v1261 = vunpack.c.h.b16 %v508
        %v1262 = vunpack.c.l.b16 %v509
        %v1263 = vunpack.c.h.b16 %v509
        %v1264 = vunpack.c.l.b16 %v510
        %v1265 = vunpack.c.h.b16 %v510
        %v1266 = vunpack.c.l.b16 %v511
        %v1267 = vunpack.c.h.b16 %v511
        %v1268 = vunpack.c.l.b16 %v512
        %v1269 = vunpack.c.h.b16 %v512
        %v1270 = vunpack.c.l.b16 %v513
        %v1271 = vunpack.c.h.b16 %v513
        %v1272 = vunpack.c.l.b16 %v514
        %v1273 = vunpack.c.h.b16 %v514
        %v1274 = vunpack.c.l.b16 %v515
        %v1275 = vunpack.c.h.b16 %v515
        %v1276 = vunpack.c.l.b16 %v516
        %v1277 = vunpack.c.h.b16 %v516
        %v1278 = vunpack.c.l.b16 %v517
        %v1279 = vunpack.c.h.b16 %v517
        %v1280 = vunpack.c.l.b16 %v518
        %v1281 = vunpack.c.h.b16 %v518
        %v1282 = vunpack.c.l.b16 %v519
        %v1283 = vunpack.c.h.b16 %v519
        %v1284 = vunpack.c.l.b16 %v520
        %v1285 = vunpack.c.h.b16 %v520
        %v1286 = vunpack.c.l.b16 %v521
        %v1287 = vunpack.c.h.b16 %v521
        %v1288 = vunpack.c.l.b16 %v522
        %v1289 = vunpack.c.h.b16 %v522
        %v1290 = vunpack.c.l.b16 %v523
        %v1291 = vunpack.c.h.b16 %v523
        %v1292 = vunpack.c.l.b16 %v524
        %v1293 = vunpack.c.h.b16 %v524
        %v1294 = vunpack.c.l.b16 %v525
        %v1295 = vunpack.c.h.b16 %v525
        %v1296 = vunpack.c.l.b16 %v526
        %v1297 = vunpack.c.h.b16 %v526
        %v1298 = vunpack.c.l.b16 %v527
        %v1299 = vunpack.c.h.b16 %v527
        %v1300 = vunpack.c.l.b16 %v528
        %v1301 = vunpack.c.h.b16 %v528
        %v1302 = vunpack.c.l.b16 %v529
        %v1303 = vunpack.c.h.b16 %v529
        %v1304 = vunpack.c.l.b16 %v530
        %v1305 = vunpack.c.h.b16 %v530
        %v1306 = vunpack.c.l.b16 %v531
        %v1307 = vunpack.c.h.b16 %v531
        %v1308 = vunpack.c.l.b16 %v532
        %v1309 = vunpack.c.h.b16 %v532
        %v1310 = vunpack.c.l.b16 %v533
        %v1311 = vunpack.c.h.b16 %v533
        %v1312 = vunpack.c.l.b16 %v534
        %v1313 = vunpack.c.h.b16 %v534
        %v1314 = vunpack.c.l.b16 %v535
        %v1315 = vunpack.c.h.b16 %v535
        %v1316 = vunpack.c.l.b16 %v536
        %v1317 = vunpack.c.h.b16 %v536
        %v1318 = vunpack.c.l.b16 %v537
        %v1319 = vunpack.c.h.b16 %v537
        %v1320 = vunpack.c.l.b16 %v538
        %v1321 = vunpack.c.h.b16 %v538
        %v1322 = vunpack.c.l.b16 %v539
        %v1323 = vunpack.c.h.b16 %v539
        %v1324 = vunpack.c.l.b16 %v540
        %v1325 = vunpack.c.h.b16 %v540
        %v1326 = vunpack.c.l.b16 %v541
        %v1327 = vunpack.c.h.b16 %v541
        %v1328 = vunpack.c.l.b16 %v542
        %v1329 = vunpack.c.h.b16 %v542
        %v1330 = vunpack.c.l.b16 %v543
        %v1331 = vunpack.c.h.b16 %v543
        %v1332 = vunpack.c.l.b16 %v544
        %v1333 = vunpack.c.h.b16 %v544
        %v1334 = vunpack.c.l.b16 %v545
        %v1335 = vunpack.c.h.b16 %v545
        %v1336 = vunpack.c.l.b16 %v546
        %v1337 = vunpack.c.h.b16 %v546
        %v1338 = vunpack.c.l.b16 %v547
        %v1339 = vunpack.c.h.b16 %v547
        %v1340 = vunpack.c.l.b16 %v548
        %v1341 = vunpack.c.h.b16 %v548
        %v1342 = vunpack.c.l.b16 %v549
        %v1343 = vunpack.c.h.b16 %v549
        %v1344 = vunpack.c.l.b16 %v550
        %v1345 = vunpack.c.h.b16 %v550
        %v1346 = vunpack.c.l.b16 %v551
        %v1347 = vunpack.c.h.b16 %v551
        %v1348 = vpack.c.b16 %v840, %v836
        %v1349 = vpack.c.b16 %v841, %v837
        %v1350 = vpack.c.b16 %v842, %v838
        %v1351 = vpack.c.b16 %v843, %v839
        %v1352 = vpack.c.b16 %v848, %v844
        %v1353 = vpack.c.b16 %v849, %v845
        %v1354 = vpack.c.b16 %v850, %v846
        %v1355 = vpack.c.b16 %v851, %v847
        %v1356 = vpack.c.b16 %v856, %v852
        %v1357 = vpack.c.b16 %v857, %v853
        %v1358 = vpack.c.b16 %v858, %v854
        %v1359 = vpack.c.b16 %v859, %v855
        %v1360 = vpack.c.b16 %v864, %v860
        %v1361 = vpack.c.b16 %v865, %v861
        %v1362 = vpack.c.b16 %v866, %v862
        %v1363 = vpack.c.b16 %v867, %v863
        %v1364 = vpack.c.b16 %v872, %v868
        %v1365 = vpack.c.b16 %v873, %v869
        %v1366 = vpack.c.b16 %v874, %v870
        %v1367 = vpack.c.b16 %v875, %v871
        %v1368 = vpack.c.b16 %v880, %v876
        %v1369 = vpack.c.b16 %v881, %v877
        %v1370 = vpack.c.b16 %v882, %v878
        %v1371 = vpack.c.b16 %v883, %v879
        %v1372 = vpack.c.b16 %v888, %v884
        %v1373 = vpack.c.b16 %v889, %v885
        %v1374 = vpack.c.b16 %v890, %v886
        %v1375 = vpack.c.b16 %v891, %v887
        %v1376 = vpack.c.b16 %v896, %v892
        %v1377 = vpack.c.b16 %v897, %v893
        %v1378 = vpack.c.b16 %v898, %v894
        %v1379 = vpack.c.b16 %v899, %v895
        %v1380 = vpack.c.b16 %v904, %v900
        %v1381 = vpack.c.b16 %v905, %v901
        %v1382 = vpack.c.b16 %v906, %v902
        %v1383 = vpack.c.b16 %v907, %v903
        %v1384 = vpack.c.b16 %v912, %v908
        %v1385 = vpack.c.b16 %v913, %v909
        %v1386 = vpack.c.b16 %v914, %v910
        %v1387 = vpack.c.b16 %v915, %v911
        %v1388 = vpack.c.b16 %v920, %v916
        %v1389 = vpack.c.b16 %v921, %v917
        %v1390 = vpack.c.b16 %v922, %v918
        %v1391 = vpack.c.b16 %v923, %v919
        %v1392 = vpack.c.b16 %v928, %v924
        %v1393 = vpack.c.b16 %v929, %v925
        %v1394 = vpack.c.b16 %v930, %v926
        %v1395 = vpack.c.b16 %v931, %v927
        %v1396 = vpack.c.b16 %v936, %v932
        %v1397 = vpack.c.b16 %v937, %v933
        %v1398 = vpack.c.b16 %v938, %v934
        %v1399 = vpack.c.b16 %v939, %v935
        %v1400 = vpack.c.b16 %v944, %v940
        %v1401 = vpack.c.b16 %v945, %v941
        %v1402 = vpack.c.b16 %v946, %v942
        %v1403 = vpack.c.b16 %v947, %v943
        %v1404 = vpack.c.b16 %v952, %v948
        %v1405 = vpack.c.b16 %v953, %v949
        %v1406 = vpack.c.b16 %v954, %v950
        %v1407 = vpack.c.b16 %v955, %v951
        %v1408 = vpack.c.b16 %v960, %v956
        %v1409 = vpack.c.b16 %v961, %v957
        %v1410 = vpack.c.b16 %v962, %v958
        %v1411 = vpack.c.b16 %v963, %v959
        %v1412 = vpack.c.b16 %v968, %v964
        %v1413 = vpack.c.b16 %v969, %v965
        %v1414 = vpack.c.b16 %v970, %v966
        %v1415 = vpack.c.b16 %v971, %v967
        %v1416 = vpack.c.b16 %v976, %v972
        %v1417 = vpack.c.b16 %v977, %v973
        %v1418 = vpack.c.b16 %v978, %v974
        %v1419 = vpack.c.b16 %v979, %v975
        %v1420 = vpack.c.b16 %v984, %v980
        %v1421 = vpack.c.b16 %v985, %v981
        %v1422 = vpack.c.b16 %v986, %v982
        %v1423 = vpack.c.b16 %v987, %v983
        %v1424 = vpack.c.b16 %v992, %v988
        %v1425 = vpack.c.b16 %v993, %v989
        %v1426 = vpack.c.b16 %v994, %v990
        %v1427 = vpack.c.b16 %v995, %v991
        %v1428 = vpack.c.b16 %v1000, %v996
        %v1429 = vpack.c.b16 %v1001, %v997
        %v1430 = vpack.c.b16 %v1002, %v998
        %v1431 = vpack.c.b16 %v1003, %v999
        %v1432 = vpack.c.b16 %v1008, %v1004
        %v1433 = vpack.c.b16 %v1009, %v1005
        %v1434 = vpack.c.b16 %v1010, %v1006
        %v1435 = vpack.c.b16 %v1011, %v1007
        %v1436 = vpack.c.b16 %v1016, %v1012
        %v1437 = vpack.c.b16 %v1017, %v1013
        %v1438 = vpack.c.b16 %v1018, %v1014
        %v1439 = vpack.c.b16 %v1019, %v1015
        %v1440 = vpack.c.b16 %v1024, %v1020
        %v1441 = vpack.c.b16 %v1025, %v1021
        %v1442 = vpack.c.b16 %v1026, %v1022
        %v1443 = vpack.c.b16 %v1027, %v1023
        %v1444 = vpack.c.b16 %v1032, %v1028
        %v1445 = vpack.c.b16 %v1033, %v1029
        %v1446 = vpack.c.b16 %v1034, %v1030
        %v1447 = vpack.c.b16 %v1035, %v1031
        %v1448 = vpack.c.b16 %v1040, %v1036
        %v1449 = vpack.c.b16 %v1041, %v1037
        %v1450 = vpack.c.b16 %v1042, %v1038
        %v1451 = vpack.c.b16 %v1043, %v1039
        %v1452 = vpack.c.b16 %v1048, %v1044
        %v1453 = vpack.c.b16 %v1049, %v1045
        %v1454 = vpack.c.b16 %v1050, %v1046
        %v1455 = vpack.c.b16 %v1051, %v1047
        %v1456 = vpack.c.b16 %v1056, %v1052
        %v1457 = vpack.c.b16 %v1057, %v1053
        %v1458 = vpack.c.b16 %v1058, %v1054
        %v1459 = vpack.c.b16 %v1059, %v1055
        %v1460 = vpack.c.b16 %v1064, %v1060
        %v1461 = vpack.c.b16 %v1065, %v1061
        %v1462 = vpack.c.b16 %v1066, %v1062
        %v1463 = vpack.c.b16 %v1067, %v1063
        %v1464 = vpack.c.b16 %v1072, %v1068
        %v1465 = vpack.c.b16 %v1073, %v1069
        %v1466 = vpack.c.b16 %v1074, %v1070
        %v1467 = vpack.c.b16 %v1075, %v1071
        %v1468 = vpack.c.b16 %v1080, %v1076
        %v1469 = vpack.c.b16 %v1081, %v1077
        %v1470 = vpack.c.b16 %v1082, %v1078
        %v1471 = vpack.c.b16 %v1083, %v1079
        %v1472 = vpack.c.b16 %v1088, %v1084
        %v1473 = vpack.c.b16 %v1089, %v1085
        %v1474 = vpack.c.b16 %v1090, %v1086
        %v1475 = vpack.c.b16 %v1091, %v1087
        %v1476 = vpack.c.b16 %v1096, %v1092
        %v1477 = vpack.c.b16 %v1097, %v1093
        %v1478 = vpack.c.b16 %v1098, %v1094
        %v1479 = vpack.c.b16 %v1099, %v1095
        %v1480 = vpack.c.b16 %v1104, %v1100
        %v1481 = vpack.c.b16 %v1105, %v1101
        %v1482 = vpack.c.b16 %v1106, %v1102
        %v1483 = vpack.c.b16 %v1107, %v1103
        %v1484 = vpack.c.b16 %v1112, %v1108
        %v1485 = vpack.c.b16 %v1113, %v1109
        %v1486 = vpack.c.b16 %v1114, %v1110
        %v1487 = vpack.c.b16 %v1115, %v1111
        %v1488 = vpack.c.b16 %v1120, %v1116
        %v1489 = vpack.c.b16 %v1121, %v1117
        %v1490 = vpack.c.b16 %v1122, %v1118
        %v1491 = vpack.c.b16 %v1123, %v1119
        %v1492 = vpack.c.b16 %v1128, %v1124
        %v1493 = vpack.c.b16 %v1129, %v1125
        %v1494 = vpack.c.b16 %v1130, %v1126
        %v1495 = vpack.c.b16 %v1131, %v1127
        %v1496 = vpack.c.b16 %v1136, %v1132
        %v1497 = vpack.c.b16 %v1137, %v1133
        %v1498 = vpack.c.b16 %v1138, %v1134
        %v1499 = vpack.c.b16 %v1139, %v1135
        %v1500 = vpack.c.b16 %v1144, %v1140
        %v1501 = vpack.c.b16 %v1145, %v1141
        %v1502 = vpack.c.b16 %v1146, %v1142
        %v1503 = vpack.c.b16 %v1147, %v1143
        %v1504 = vpack.c.b16 %v1152, %v1148
        %v1505 = vpack.c.b16 %v1153, %v1149
        %v1506 = vpack.c.b16 %v1154, %v1150
        %v1507 = vpack.c.b16 %v1155, %v1151
        %v1508 = vpack.c.b16 %v1160, %v1156
        %v1509 = vpack.c.b16 %v1161, %v1157
        %v1510 = vpack.c.b16 %v1162, %v1158
        %v1511 = vpack.c.b16 %v1163, %v1159
        %v1512 = vpack.c.b16 %v1168, %v1164
        %v1513 = vpack.c.b16 %v1169, %v1165
        %v1514 = vpack.c.b16 %v1170, %v1166
        %v1515 = vpack.c.b16 %v1171, %v1167
        %v1516 = vpack.c.b16 %v1176, %v1172
        %v1517 = vpack.c.b16 %v1177, %v1173
        %v1518 = vpack.c.b16 %v1178, %v1174
        %v1519 = vpack.c.b16 %v1179, %v1175
        %v1520 = vpack.c.b16 %v1184, %v1180
        %v1521 = vpack.c.b16 %v1185, %v1181
        %v1522 = vpack.c.b16 %v1186, %v1182
        %v1523 = vpack.c.b16 %v1187, %v1183
        %v1524 = vpack.c.b16 %v1192, %v1188
        %v1525 = vpack.c.b16 %v1193, %v1189
        %v1526 = vpack.c.b16 %v1194, %v1190
        %v1527 = vpack.c.b16 %v1195, %v1191
        %v1528 = vpack.c.b16 %v1200, %v1196
        %v1529 = vpack.c.b16 %v1201, %v1197
        %v1530 = vpack.c.b16 %v1202, %v1198
        %v1531 = vpack.c.b16 %v1203, %v1199
        %v1532 = vpack.c.b16 %v1208, %v1204
        %v1533 = vpack.c.b16 %v1209, %v1205
        %v1534 = vpack.c.b16 %v1210, %v1206
        %v1535 = vpack.c.b16 %v1211, %v1207
        %v1536 = vpack.c.b16 %v1216, %v1212
        %v1537 = vpack.c.b16 %v1217, %v1213
        %v1538 = vpack.c.b16 %v1218, %v1214
        %v1539 = vpack.c.b16 %v1219, %v1215
        %v1540 = vpack.c.b16 %v1224, %v1220
        %v1541 = vpack.c.b16 %v1225, %v1221
        %v1542 = vpack.c.b16 %v1226, %v1222
        %v1543 = vpack.c.b16 %v1227, %v1223
        %v1544 = vpack.c.b16 %v1232, %v1228
        %v1545 = vpack.c.b16 %v1233, %v1229
        %v1546 = vpack.c.b16 %v1234, %v1230
        %v1547 = vpack.c.b16 %v1235, %v1231
        %v1548 = vpack.c.b16 %v1240, %v1236
        %v1549 = vpack.c.b16 %v1241, %v1237
        %v1550 = vpack.c.b16 %v1242, %v1238
        %v1551 = vpack.c.b16 %v1243, %v1239
        %v1552 = vpack.c.b16 %v1248, %v1244
        %v1553 = vpack.c.b16 %v1249, %v1245
        %v1554 = vpack.c.b16 %v1250, %v1246
        %v1555 = vpack.c.b16 %v1251, %v1247
        %v1556 = vpack.c.b16 %v1256, %v1252
        %v1557 = vpack.c.b16 %v1257, %v1253
        %v1558 = vpack.c.b16 %v1258, %v1254
        %v1559 = vpack.c.b16 %v1259, %v1255
        %v1560 = vpack.c.b16 %v1264, %v1260
        %v1561 = vpack.c.b16 %v1265, %v1261
        %v1562 = vpack.c.b16 %v1266, %v1262
        %v1563 = vpack.c.b16 %v1267, %v1263
        %v1564 = vpack.c.b16 %v1272, %v1268
        %v1565 = vpack.c.b16 %v1273, %v1269
        %v1566 = vpack.c.b16 %v1274, %v1270
        %v1567 = vpack.c.b16 %v1275, %v1271
        %v1568 = vpack.c.b16 %v1280, %v1276
        %v1569 = vpack.c.b16 %v1281, %v1277
        %v1570 = vpack.c.b16 %v1282, %v1278
        %v1571 = vpack.c.b16 %v1283, %v1279
        %v1572 = vpack.c.b16 %v1288, %v1284
        %v1573 = vpack.c.b16 %v1289, %v1285
        %v1574 = vpack.c.b16 %v1290, %v1286
        %v1575 = vpack.c.b16 %v1291, %v1287
        %v1576 = vpack.c.b16 %v1296, %v1292
        %v1577 = vpack.c.b16 %v1297, %v1293
        %v1578 = vpack.c.b16 %v1298, %v1294
        %v1579 = vpack.c.b16 %v1299, %v1295
        %v1580 = vpack.c.b16 %v1304, %v1300
        %v1581 = vpack.c.b16 %v1305, %v1301
        %v1582 = vpack.c.b16 %v1306, %v1302
        %v1583 = vpack.c.b16 %v1307, %v1303
        %v1584 = vpack.c.b16 %v1312, %v1308
        %v1585 = vpack.c.b16 %v1313, %v1309
        %v1586 = vpack.c.b16 %v1314, %v1310
        %v1587 = vpack.c.b16 %v1315, %v1311
        %v1588 = vpack.c.b16 %v1320, %v1316
        %v1589 = vpack.c.b16 %v1321, %v1317
        %v1590 = vpack.c.b16 %v1322, %v1318
        %v1591 = vpack.c.b16 %v1323, %v1319
        %v1592 = vpack.c.b16 %v1328, %v1324
        %v1593 = vpack.c.b16 %v1329, %v1325
        %v1594 = vpack.c.b16 %v1330, %v1326
        %v1595 = vpack.c.b16 %v1331, %v1327
        %v1596 = vpack.c.b16 %v1336, %v1332
        %v1597 = vpack.c.b16 %v1337, %v1333
        %v1598 = vpack.c.b16 %v1338, %v1334
        %v1599 = vpack.c.b16 %v1339, %v1335
        %v1600 = vpack.c.b16 %v1344, %v1340
        %v1601 = vpack.c.b16 %v1345, %v1341
        %v1602 = vpack.c.b16 %v1346, %v1342
        %v1603 = vpack.c.b16 %v1347, %v1343
        %1860 = vmatprep.subr.bf16.mxu0 %v1377
        %1861 = vmatpush1.bf16.msra.mxu0 %v1376
        %1862 = vmatprep.subr.bf16.mxu0 %v1373
        %1863 = vmatpush1.bf16.msra.mxu0 %v1372
        %1864 = vmatprep.subr.bf16.mxu0 %v1369
        %1865 = vmatpush1.bf16.msra.mxu0 %v1368
        %1866 = vmatprep.subr.bf16.mxu0 %v1365
        %1867 = vmatpush1.bf16.msra.mxu0 %v1364
        %1868 = vmatprep.subr.bf16.mxu0 %v1361
        %1869 = vmatpush1.bf16.msra.mxu0 %v1360
        %1870 = vmatprep.subr.bf16.mxu0 %v1357
        %1871 = vmatpush1.bf16.msra.mxu0 %v1356
        %1872 = vmatprep.subr.bf16.mxu0 %v1353
        %1873 = vmatpush1.bf16.msra.mxu0 %v1352
        %1874 = vmatprep.subr.bf16.mxu0 %v1349
        %1875 = vmatpush1.bf16.msra.mxu0 %v1348
        %1876 = vmatprep.subr.bf16.mxu0 %v1409
        %1877 = vmatpush2.bf16.msra.mxu0 %v1408
        %1878 = vmatprep.subr.bf16.mxu0 %v1405
        %1879 = vmatpush2.bf16.msra.mxu0 %v1404
        %1880 = vmatprep.subr.bf16.mxu0 %v1401
        %1881 = vmatpush2.bf16.msra.mxu0 %v1400
        %1882 = vmatprep.subr.bf16.mxu0 %v1397
        %1883 = vmatpush2.bf16.msra.mxu0 %v1396
        %1884 = vmatprep.subr.bf16.mxu0 %v1393
        %1885 = vmatpush2.bf16.msra.mxu0 %v1392
        %1886 = vmatprep.subr.bf16.mxu0 %v1389
        %1887 = vmatpush2.bf16.msra.mxu0 %v1388
        %1888 = vmatprep.subr.bf16.mxu0 %v1385
        %1889 = vmatpush2.bf16.msra.mxu0 %v1384
        %1890 = vmatprep.subr.bf16.mxu0 %v1381
        %1891 = vmatpush2.bf16.msra.mxu0 %v1380
        %1892 = vmatprep.mubr.bf16.mxu0 %v565
        %1893 = vmatmul.mubr.bf16.gmra.mxu0 %v564
        %v1894 = vpop.f32.mrf.mxu0
        %v1895 = vadd.f32 0.0, %v1894
        %v1896 = vpop.f32.mrf.mxu0
        %v1897 = vadd.f32 0.0, %v1896
        %v1898 = vpop.f32.mrf.mxu0
        %v1899 = vpop.f32.mrf.mxu0
        %1900 = vdwg.mxu0
        %1901 = vmatprep.subr.bf16.mxu0 %v1441
        %1902 = vmatpush1.bf16.msra.mxu0 %v1440
        %1903 = vmatprep.subr.bf16.mxu0 %v1437
        %1904 = vmatpush1.bf16.msra.mxu0 %v1436
        %1905 = vmatprep.subr.bf16.mxu0 %v1433
        %1906 = vmatpush1.bf16.msra.mxu0 %v1432
        %1907 = vmatprep.subr.bf16.mxu0 %v1429
        %1908 = vmatpush1.bf16.msra.mxu0 %v1428
        %1909 = vmatprep.subr.bf16.mxu0 %v1425
        %1910 = vmatpush1.bf16.msra.mxu0 %v1424
        %1911 = vmatprep.subr.bf16.mxu0 %v1421
        %1912 = vmatpush1.bf16.msra.mxu0 %v1420
        %1913 = vmatprep.subr.bf16.mxu0 %v1417
        %1914 = vmatpush1.bf16.msra.mxu0 %v1416
        %1915 = vmatprep.subr.bf16.mxu0 %v1413
        %1916 = vmatpush1.bf16.msra.mxu0 %v1412
        %1917 = vmatprep.subr.bf16.mxu0 %v1473
        %1918 = vmatpush2.bf16.msra.mxu0 %v1472
        %1919 = vmatprep.subr.bf16.mxu0 %v1469
        %1920 = vmatpush2.bf16.msra.mxu0 %v1468
        %1921 = vmatprep.subr.bf16.mxu0 %v1465
        %1922 = vmatpush2.bf16.msra.mxu0 %v1464
        %1923 = vmatprep.subr.bf16.mxu0 %v1461
        %1924 = vmatpush2.bf16.msra.mxu0 %v1460
        %1925 = vmatprep.subr.bf16.mxu0 %v1457
        %1926 = vmatpush2.bf16.msra.mxu0 %v1456
        %1927 = vmatprep.subr.bf16.mxu0 %v1453
        %1928 = vmatpush2.bf16.msra.mxu0 %v1452
        %1929 = vmatprep.subr.bf16.mxu0 %v1449
        %1930 = vmatpush2.bf16.msra.mxu0 %v1448
        %1931 = vmatprep.subr.bf16.mxu0 %v1445
        %1932 = vmatpush2.bf16.msra.mxu0 %v1444
        %1933 = vmatprep.mubr.bf16.mxu0 %v567
        %1934 = vmatmul.mubr.bf16.gmra.mxu0 %v566
        %v1935 = vpop.f32.mrf.mxu0
        %v1936 = vadd.f32 %v1895, %v1935
        %v1937 = vpop.f32.mrf.mxu0
        %v1938 = vadd.f32 %v1897, %v1937
        %v1939 = vpop.f32.mrf.mxu0
        %v1940 = vpop.f32.mrf.mxu0
        %1941 = vdwg.mxu0
        %1942 = vmatprep.subr.bf16.mxu0 %v1505
        %1943 = vmatpush1.bf16.msra.mxu0 %v1504
        %1944 = vmatprep.subr.bf16.mxu0 %v1501
        %1945 = vmatpush1.bf16.msra.mxu0 %v1500
        %1946 = vmatprep.subr.bf16.mxu0 %v1497
        %1947 = vmatpush1.bf16.msra.mxu0 %v1496
        %1948 = vmatprep.subr.bf16.mxu0 %v1493
        %1949 = vmatpush1.bf16.msra.mxu0 %v1492
        %1950 = vmatprep.subr.bf16.mxu0 %v1489
        %1951 = vmatpush1.bf16.msra.mxu0 %v1488
        %1952 = vmatprep.subr.bf16.mxu0 %v1485
        %1953 = vmatpush1.bf16.msra.mxu0 %v1484
        %1954 = vmatprep.subr.bf16.mxu0 %v1481
        %1955 = vmatpush1.bf16.msra.mxu0 %v1480
        %1956 = vmatprep.subr.bf16.mxu0 %v1477
        %1957 = vmatpush1.bf16.msra.mxu0 %v1476
        %1958 = vmatprep.subr.bf16.mxu0 %v1537
        %1959 = vmatpush2.bf16.msra.mxu0 %v1536
        %1960 = vmatprep.subr.bf16.mxu0 %v1533
        %1961 = vmatpush2.bf16.msra.mxu0 %v1532
        %1962 = vmatprep.subr.bf16.mxu0 %v1529
        %1963 = vmatpush2.bf16.msra.mxu0 %v1528
        %1964 = vmatprep.subr.bf16.mxu0 %v1525
        %1965 = vmatpush2.bf16.msra.mxu0 %v1524
        %1966 = vmatprep.subr.bf16.mxu0 %v1521
        %1967 = vmatpush2.bf16.msra.mxu0 %v1520
        %1968 = vmatprep.subr.bf16.mxu0 %v1517
        %1969 = vmatpush2.bf16.msra.mxu0 %v1516
        %1970 = vmatprep.subr.bf16.mxu0 %v1513
        %1971 = vmatpush2.bf16.msra.mxu0 %v1512
        %1972 = vmatprep.subr.bf16.mxu0 %v1509
        %1973 = vmatpush2.bf16.msra.mxu0 %v1508
        %1974 = vmatprep.mubr.bf16.mxu0 %v569
        %1975 = vmatmul.mubr.bf16.gmra.mxu0 %v568
        %v1976 = vpop.f32.mrf.mxu0
        %v1977 = vadd.f32 %v1936, %v1976
        %v1978 = vpop.f32.mrf.mxu0
        %v1979 = vadd.f32 %v1938, %v1978
        %v1980 = vpop.f32.mrf.mxu0
        %v1981 = vpop.f32.mrf.mxu0
        %1982 = vdwg.mxu0
        %1983 = vmatprep.subr.bf16.mxu0 %v1569
        %1984 = vmatpush1.bf16.msra.mxu0 %v1568
        %1985 = vmatprep.subr.bf16.mxu0 %v1565
        %1986 = vmatpush1.bf16.msra.mxu0 %v1564
        %1987 = vmatprep.subr.bf16.mxu0 %v1561
        %1988 = vmatpush1.bf16.msra.mxu0 %v1560
        %1989 = vmatprep.subr.bf16.mxu0 %v1557
        %1990 = vmatpush1.bf16.msra.mxu0 %v1556
        %1991 = vmatprep.subr.bf16.mxu0 %v1553
        %1992 = vmatpush1.bf16.msra.mxu0 %v1552
        %1993 = vmatprep.subr.bf16.mxu0 %v1549
        %1994 = vmatpush1.bf16.msra.mxu0 %v1548
        %1995 = vmatprep.subr.bf16.mxu0 %v1545
        %1996 = vmatpush1.bf16.msra.mxu0 %v1544
        %1997 = vmatprep.subr.bf16.mxu0 %v1541
        %1998 = vmatpush1.bf16.msra.mxu0 %v1540
        %1999 = vmatprep.subr.bf16.mxu0 %v1601
        %2000 = vmatpush2.bf16.msra.mxu0 %v1600
        %2001 = vmatprep.subr.bf16.mxu0 %v1597
        %2002 = vmatpush2.bf16.msra.mxu0 %v1596
        %2003 = vmatprep.subr.bf16.mxu0 %v1593
        %2004 = vmatpush2.bf16.msra.mxu0 %v1592
        %2005 = vmatprep.subr.bf16.mxu0 %v1589
        %2006 = vmatpush2.bf16.msra.mxu0 %v1588
        %2007 = vmatprep.subr.bf16.mxu0 %v1585
        %2008 = vmatpush2.bf16.msra.mxu0 %v1584
        %2009 = vmatprep.subr.bf16.mxu0 %v1581
        %2010 = vmatpush2.bf16.msra.mxu0 %v1580
        %2011 = vmatprep.subr.bf16.mxu0 %v1577
        %2012 = vmatpush2.bf16.msra.mxu0 %v1576
        %2013 = vmatprep.subr.bf16.mxu0 %v1573
        %2014 = vmatpush2.bf16.msra.mxu0 %v1572
        %2015 = vmatprep.mubr.bf16.mxu0 %v571
        %2016 = vmatmul.mubr.bf16.gmra.mxu0 %v570
        %v2017 = vpop.f32.mrf.mxu0
        %v2018 = vadd.f32 %v1977, %v2017
        %v2019 = vpop.f32.mrf.mxu0
        %v2020 = vadd.f32 %v1979, %v2019
        %v2021 = vpop.f32.mrf.mxu0
        %v2022 = vpop.f32.mrf.mxu0
        %2023 = vdwg.mxu0
        %2024 = vmatprep.subr.bf16.mxu0 %v1379
        %2025 = vmatpush1.bf16.msra.mxu0 %v1378
        %2026 = vmatprep.subr.bf16.mxu0 %v1375
        %2027 = vmatpush1.bf16.msra.mxu0 %v1374
        %2028 = vmatprep.subr.bf16.mxu0 %v1371
        %2029 = vmatpush1.bf16.msra.mxu0 %v1370
        %2030 = vmatprep.subr.bf16.mxu0 %v1367
        %2031 = vmatpush1.bf16.msra.mxu0 %v1366
        %2032 = vmatprep.subr.bf16.mxu0 %v1363
        %2033 = vmatpush1.bf16.msra.mxu0 %v1362
        %2034 = vmatprep.subr.bf16.mxu0 %v1359
        %2035 = vmatpush1.bf16.msra.mxu0 %v1358
        %2036 = vmatprep.subr.bf16.mxu0 %v1355
        %2037 = vmatpush1.bf16.msra.mxu0 %v1354
        %2038 = vmatprep.subr.bf16.mxu0 %v1351
        %2039 = vmatpush1.bf16.msra.mxu0 %v1350
        %2040 = vmatprep.subr.bf16.mxu0 %v1411
        %2041 = vmatpush2.bf16.msra.mxu0 %v1410
        %2042 = vmatprep.subr.bf16.mxu0 %v1407
        %2043 = vmatpush2.bf16.msra.mxu0 %v1406
        %2044 = vmatprep.subr.bf16.mxu0 %v1403
        %2045 = vmatpush2.bf16.msra.mxu0 %v1402
        %2046 = vmatprep.subr.bf16.mxu0 %v1399
        %2047 = vmatpush2.bf16.msra.mxu0 %v1398
        %2048 = vmatprep.subr.bf16.mxu0 %v1395
        %2049 = vmatpush2.bf16.msra.mxu0 %v1394
        %2050 = vmatprep.subr.bf16.mxu0 %v1391
        %2051 = vmatpush2.bf16.msra.mxu0 %v1390
        %2052 = vmatprep.subr.bf16.mxu0 %v1387
        %2053 = vmatpush2.bf16.msra.mxu0 %v1386
        %2054 = vmatprep.subr.bf16.mxu0 %v1383
        %2055 = vmatpush2.bf16.msra.mxu0 %v1382
        %2056 = vmatprep.mubr.bf16.mxu0 %v565
        %2057 = vmatmul.mubr.bf16.gmra.mxu0 %v564
        %v2058 = vpop.f32.mrf.mxu0
        %v2059 = vadd.f32 0.0, %v2058
        %v2060 = vpop.f32.mrf.mxu0
        %v2061 = vadd.f32 0.0, %v2060
        %v2062 = vpop.f32.mrf.mxu0
        %v2063 = vpop.f32.mrf.mxu0
        %2064 = vdwg.mxu0
        %2065 = vmatprep.subr.bf16.mxu0 %v1443
        %2066 = vmatpush1.bf16.msra.mxu0 %v1442
        %2067 = vmatprep.subr.bf16.mxu0 %v1439
        %2068 = vmatpush1.bf16.msra.mxu0 %v1438
        %2069 = vmatprep.subr.bf16.mxu0 %v1435
        %2070 = vmatpush1.bf16.msra.mxu0 %v1434
        %2071 = vmatprep.subr.bf16.mxu0 %v1431
        %2072 = vmatpush1.bf16.msra.mxu0 %v1430
        %2073 = vmatprep.subr.bf16.mxu0 %v1427
        %2074 = vmatpush1.bf16.msra.mxu0 %v1426
        %2075 = vmatprep.subr.bf16.mxu0 %v1423
        %2076 = vmatpush1.bf16.msra.mxu0 %v1422
        %2077 = vmatprep.subr.bf16.mxu0 %v1419
        %2078 = vmatpush1.bf16.msra.mxu0 %v1418
        %2079 = vmatprep.subr.bf16.mxu0 %v1415
        %2080 = vmatpush1.bf16.msra.mxu0 %v1414
        %2081 = vmatprep.subr.bf16.mxu0 %v1475
        %2082 = vmatpush2.bf16.msra.mxu0 %v1474
        %2083 = vmatprep.subr.bf16.mxu0 %v1471
        %2084 = vmatpush2.bf16.msra.mxu0 %v1470
        %2085 = vmatprep.subr.bf16.mxu0 %v1467
        %2086 = vmatpush2.bf16.msra.mxu0 %v1466
        %2087 = vmatprep.subr.bf16.mxu0 %v1463
        %2088 = vmatpush2.bf16.msra.mxu0 %v1462
        %2089 = vmatprep.subr.bf16.mxu0 %v1459
        %2090 = vmatpush2.bf16.msra.mxu0 %v1458
        %2091 = vmatprep.subr.bf16.mxu0 %v1455
        %2092 = vmatpush2.bf16.msra.mxu0 %v1454
        %2093 = vmatprep.subr.bf16.mxu0 %v1451
        %2094 = vmatpush2.bf16.msra.mxu0 %v1450
        %2095 = vmatprep.subr.bf16.mxu0 %v1447
        %2096 = vmatpush2.bf16.msra.mxu0 %v1446
        %2097 = vmatprep.mubr.bf16.mxu0 %v567
        %2098 = vmatmul.mubr.bf16.gmra.mxu0 %v566
        %v2099 = vpop.f32.mrf.mxu0
        %v2100 = vadd.f32 %v2059, %v2099
        %v2101 = vpop.f32.mrf.mxu0
        %v2102 = vadd.f32 %v2061, %v2101
        %v2103 = vpop.f32.mrf.mxu0
        %v2104 = vpop.f32.mrf.mxu0
        %2105 = vdwg.mxu0
        %2106 = vmatprep.subr.bf16.mxu0 %v1507
        %2107 = vmatpush1.bf16.msra.mxu0 %v1506
        %2108 = vmatprep.subr.bf16.mxu0 %v1503
        %2109 = vmatpush1.bf16.msra.mxu0 %v1502
        %2110 = vmatprep.subr.bf16.mxu0 %v1499
        %2111 = vmatpush1.bf16.msra.mxu0 %v1498
        %2112 = vmatprep.subr.bf16.mxu0 %v1495
        %2113 = vmatpush1.bf16.msra.mxu0 %v1494
        %2114 = vmatprep.subr.bf16.mxu0 %v1491
        %2115 = vmatpush1.bf16.msra.mxu0 %v1490
        %2116 = vmatprep.subr.bf16.mxu0 %v1487
        %2117 = vmatpush1.bf16.msra.mxu0 %v1486
        %2118 = vmatprep.subr.bf16.mxu0 %v1483
        %2119 = vmatpush1.bf16.msra.mxu0 %v1482
        %2120 = vmatprep.subr.bf16.mxu0 %v1479
        %2121 = vmatpush1.bf16.msra.mxu0 %v1478
        %2122 = vmatprep.subr.bf16.mxu0 %v1539
        %2123 = vmatpush2.bf16.msra.mxu0 %v1538
        %2124 = vmatprep.subr.bf16.mxu0 %v1535
        %2125 = vmatpush2.bf16.msra.mxu0 %v1534
        %2126 = vmatprep.subr.bf16.mxu0 %v1531
        %2127 = vmatpush2.bf16.msra.mxu0 %v1530
        %2128 = vmatprep.subr.bf16.mxu0 %v1527
        %2129 = vmatpush2.bf16.msra.mxu0 %v1526
        %2130 = vmatprep.subr.bf16.mxu0 %v1523
        %2131 = vmatpush2.bf16.msra.mxu0 %v1522
        %2132 = vmatprep.subr.bf16.mxu0 %v1519
        %2133 = vmatpush2.bf16.msra.mxu0 %v1518
        %2134 = vmatprep.subr.bf16.mxu0 %v1515
        %2135 = vmatpush2.bf16.msra.mxu0 %v1514
        %2136 = vmatprep.subr.bf16.mxu0 %v1511
        %2137 = vmatpush2.bf16.msra.mxu0 %v1510
        %2138 = vmatprep.mubr.bf16.mxu0 %v569
        %2139 = vmatmul.mubr.bf16.gmra.mxu0 %v568
        %v2140 = vpop.f32.mrf.mxu0
        %v2141 = vadd.f32 %v2100, %v2140
        %v2142 = vpop.f32.mrf.mxu0
        %v2143 = vadd.f32 %v2102, %v2142
        %v2144 = vpop.f32.mrf.mxu0
        %v2145 = vpop.f32.mrf.mxu0
        %2146 = vdwg.mxu0
        %2147 = vmatprep.subr.bf16.mxu0 %v1571
        %2148 = vmatpush1.bf16.msra.mxu0 %v1570
        %2149 = vmatprep.subr.bf16.mxu0 %v1567
        %2150 = vmatpush1.bf16.msra.mxu0 %v1566
        %2151 = vmatprep.subr.bf16.mxu0 %v1563
        %2152 = vmatpush1.bf16.msra.mxu0 %v1562
        %2153 = vmatprep.subr.bf16.mxu0 %v1559
        %2154 = vmatpush1.bf16.msra.mxu0 %v1558
        %2155 = vmatprep.subr.bf16.mxu0 %v1555
        %2156 = vmatpush1.bf16.msra.mxu0 %v1554
        %2157 = vmatprep.subr.bf16.mxu0 %v1551
        %2158 = vmatpush1.bf16.msra.mxu0 %v1550
        %2159 = vmatprep.subr.bf16.mxu0 %v1547
        %2160 = vmatpush1.bf16.msra.mxu0 %v1546
        %2161 = vmatprep.subr.bf16.mxu0 %v1543
        %2162 = vmatpush1.bf16.msra.mxu0 %v1542
        %2163 = vmatprep.subr.bf16.mxu0 %v1603
        %2164 = vmatpush2.bf16.msra.mxu0 %v1602
        %2165 = vmatprep.subr.bf16.mxu0 %v1599
        %2166 = vmatpush2.bf16.msra.mxu0 %v1598
        %2167 = vmatprep.subr.bf16.mxu0 %v1595
        %2168 = vmatpush2.bf16.msra.mxu0 %v1594
        %2169 = vmatprep.subr.bf16.mxu0 %v1591
        %2170 = vmatpush2.bf16.msra.mxu0 %v1590
        %2171 = vmatprep.subr.bf16.mxu0 %v1587
        %2172 = vmatpush2.bf16.msra.mxu0 %v1586
        %2173 = vmatprep.subr.bf16.mxu0 %v1583
        %2174 = vmatpush2.bf16.msra.mxu0 %v1582
        %2175 = vmatprep.subr.bf16.mxu0 %v1579
        %2176 = vmatpush2.bf16.msra.mxu0 %v1578
        %2177 = vmatprep.subr.bf16.mxu0 %v1575
        %2178 = vmatpush2.bf16.msra.mxu0 %v1574
        %2179 = vmatprep.mubr.bf16.mxu0 %v571
        %2180 = vmatmul.mubr.bf16.gmra.mxu0 %v570
        %v2181 = vpop.f32.mrf.mxu0
        %v2182 = vadd.f32 %v2141, %v2181
        %v2183 = vpop.f32.mrf.mxu0
        %v2184 = vadd.f32 %v2143, %v2183
        %v2185 = vpop.f32.mrf.mxu0
        %v2186 = vpop.f32.mrf.mxu0
        %2187 = vdwg.mxu0
        %v2188 = vadd.f32 %v288, %v2018
        %v2189 = vadd.f32 %v289, %v2020
        %v2190 = vadd.f32 %v290, %v2182
        %v2191 = vadd.f32 %v291, %v2184
        %2192 = vst [vmem:[#allocation2] sm:$0xff] %v2188
        %2193 = vst [vmem:[#allocation2 + $0x8] sm:$0xff] %v2189
        %2194 = vst [vmem:[#allocation2 + $0x10] sm:$0xff] %v2190
        %2195 = vst [vmem:[#allocation2 + $0x18] sm:$0xff] %v2191
        // Predicated region
        $region49: #{tpu_custom_call.1} parent=31 // pred_check
          %p2196 = pneg %p280
        $region50: #{tpu_custom_call.1} parent=31 // pred_check_branch
          %2198 = sbr.rel (%p2196) target = $region52
        $region51: #{tpu_custom_call.1} parent=31 // pred_region
          %v2199 = vld [vmem:[#allocation2] sm:$0xff]
          %v2200 = vld [vmem:[#allocation2 + $0x8] sm:$0xff]
          %v2201 = vld [vmem:[#allocation2 + $0x10] sm:$0xff]
          %v2202 = vld [vmem:[#allocation2 + $0x18] sm:$0xff]
          %v2203 = vld [vmem:[%s247] sm:$0xf]
          %v2205 = vlaneseq
          %v2206 = vshrl.u32 %v2205, 7
          %v2207 = vsub.s32 0, %v2206
          %v2208 = vrot.slane %v2203, %v2207
          %v2209 = vlaneseq
          %v2210 = vshrl.u32 %v2209, 7
          %v2211 = vsub.s32 1, %v2210
          %v2212 = vrot.slane %v2203, %v2211
          %v2213 = vlaneseq
          %v2214 = vshrl.u32 %v2213, 7
          %v2215 = vsub.s32 2, %v2214
          %v2216 = vrot.slane %v2203, %v2215
          %v2217 = vlaneseq
          %v2218 = vshrl.u32 %v2217, 7
          %v2219 = vsub.s32 3, %v2218
          %v2220 = vrot.slane %v2203, %v2219
          %v2225 = vadd.f32 %v2199, %v2208
          %v2226 = vadd.f32 %v2200, %v2212
          %v2227 = vadd.f32 %v2201, %v2216
          %v2228 = vadd.f32 %v2202, %v2220
          %2229 = vst [vmem:[%s274] sm:$0xff] %v2225
          %2230 = vst [vmem:[%s274 + $0x8] sm:$0xff] %v2226
          %2231 = vst [vmem:[%s274 + $0x10] sm:$0xff] %v2227
          %2232 = vst [vmem:[%s274 + $0x18] sm:$0xff] %v2228
        $region52: #{tpu_custom_call.1} parent=31 // pred_fallthru
          _
        %s2233 = sand.u32 %s132, 1
        %s2234 = scalar_lea.sflag [#allocation5], %s2233
        %s2235 = sand.u32 %s132, 1
        %s2236 = smul.addr %s2235, 32
        %s2237 = scalar_lea.vmem [#allocation9], %s2236
        // Predicated region
        $region53: #{tpu_custom_call.1} parent=31 // pred_check
          %p2238 = pneg %p142
        $region54: #{tpu_custom_call.1} parent=31 // pred_check_branch
          %2240 = sbr.rel (%p2238) target = $region56
        $region55: #{tpu_custom_call.1} parent=31 // pred_region
          %s2241 = smul.u32 4, %s27
          %s2243 = ssub.s32 512, 512
          %2244 = vsyncadd %s2234, %s2243
          %s2245 = smul.addr %s26, 8
          %s2246 = sadd.s32 %s2241, %s2245
          %s2247 = smul.addr %s2246, 128
          %s2248 = scalar_lea.hbm %s3, %s2247
          %s2250 = sshll.u32 %s2237, 4
          %s2251 = int_to_ptr.vmem [resolvable:$true] %s2250
          %2253 = dma.vmem_to_hbm [thread:$0]  %s2251, 512, %s2248, %s2234
        $region56: #{tpu_custom_call.1} parent=31 // pred_fallthru
          _
      $region32: #{tpu_custom_call.1} parent=5 // pred_fallthru
        _
      %p2254 = scmp.le.s32.totalorder 2, %s16
      // Predicated region
      $region57: #{tpu_custom_call.1} parent=5 // pred_check
        %p2255 = pneg %p2254
      $region58: #{tpu_custom_call.1} parent=5 // pred_check_branch
        %2257 = sbr.rel (%p2255) target = $region60
      $region59: #{tpu_custom_call.1} parent=5 // pred_region
        %s2258 = ssub.s32 %s16, 2
        // Predicated region
        $region61: #{tpu_custom_call.1} parent=59 // pred_check
          %p2259 = pneg %p148
        $region62: #{tpu_custom_call.1} parent=59 // pred_check_branch
          %2261 = sbr.rel (%p2259) target = $region64
        $region63: #{tpu_custom_call.1} parent=59 // pred_region
          %s2262 = sand.u32 %s133, 1
          %s2263 = scalar_lea.sflag [#allocation5], %s2262
          %s2264 = sand.u32 %s133, 1
          %s2265 = smul.addr %s2264, 32
          %s2266 = scalar_lea.vmem [#allocation9], %s2265
          %2267 = dma.done %s2263, 512
        $region64: #{tpu_custom_call.1} parent=59 // pred_fallthru
          _
      $region60: #{tpu_custom_call.1} parent=5 // pred_fallthru
        _
    $region6: #{tpu_custom_call.1} parent=1 // loop_footer
      %s20 = sadd.s32 1, %s16
    $region7: #{tpu_custom_call.1} parent=1 // loop_footer_branch
      %15 = sbr.rel target = $region3
    $region8: #{tpu_custom_call.1} parent=1 // loop_exit
      _
    %2268 = vsyncpa [#allocation4], 1
    %s2269 = scalar_lea.sflag [#allocation4], 1
    %2270 = vsyncpa %s2269, 1
    %2271 = vsyncpa [#allocation7], 1
    %s2272 = scalar_lea.sflag [#allocation7], 1
    %2273 = vsyncpa %s2272, 1
    %2274 = vsyncpa [#allocation5], 1
    %s2275 = scalar_lea.sflag [#allocation5], 1
    %2276 = vsyncpa %s2275, 1

</llo_original>
